<compile_context>
chip_gen: v7x
topology: tpu7x:2x2x1
jax: 0.10.0
libtpu: 0.0.40
codegen_flags: <defaults>
</compile_context>

<pallas_src>
import functools

import jax
import jax.numpy as jnp
from jax.experimental import pallas as pl
from jax.experimental.pallas import tpu as pltpu


# -----------------------------------------------------------------------------
# Fused MLP kernel (single invocation, all operands resident in VMEM).
# refs = (x, w_bb_0, b_bb_0, ..., w_bb_{L-1}, b_bb_{L-1}, w_out, b_out, out)
#   x      : (B, Din_eff)        f32  (ensemble packed into lanes for 3-D x)
#   w_bb_i : (K_i, E*H)          f32/bf16  (lane-packed / block-diagonal)
#   b_bb_i : (1, E*H)            f32
#   w_out  : (E, H, out_dim)     f32/bf16  (per-member)
#   b_out  : (E, 1, out_dim)     f32
#   out    : (E, B, out_dim)     f32
# -----------------------------------------------------------------------------
def _fused_mlp_kernel(*refs, n_backbone, ensemble_size, hidden_features):
    x_ref = refs[0]
    o_ref = refs[-1]
    wout_ref = refs[-3]
    bout_ref = refs[-2]

    def mm(lhs, w):
        if lhs.dtype != w.dtype:            # only when weights are stored bf16
            lhs = lhs.astype(w.dtype)
        return jnp.dot(lhs, w, preferred_element_type=jnp.float32)

    # Backbone: ensemble carried in the lane dim -> each matmul is one
    # lane-dense MXU push; bias add + Swish stay in f32 (sigmoid on EUP).
    h = x_ref[...]
    for i in range(n_backbone):
        w = refs[1 + 2 * i][...]
        b = refs[2 + 2 * i][...]
        h = mm(h, w) + b
        h = h * jax.nn.sigmoid(h)           # Swish

    # Output layer: per-member lane slice of h -> lane-dense (B, out_dim).
    H = hidden_features
    for e in range(ensemble_size):          # unrolled at trace time (E = 7)
        he = h[:, e * H:(e + 1) * H]        # (B, H) static lane slice
        y = mm(he, wout_ref[e]) + bout_ref[e]
        o_ref[e] = y.astype(o_ref.dtype)


# -----------------------------------------------------------------------------
# One-time parameter repacking (hoisted out of the forward path entirely).
# -----------------------------------------------------------------------------
def _block_diag(blocks):
    """(E, r, c) -> (E*r, E*c) block-diagonal.  Runs once at pack time."""
    E, r, c = blocks.shape
    out = jnp.zeros((E * r, E * c), blocks.dtype)
    for e in range(E):
        out = out.at[e * r:(e + 1) * r, e * c:(e + 1) * c].set(blocks[e])
    return out


def pack_params(params, *, obs_dim, num_bins, with_reward=True,
                weight_dtype=jnp.float32):
    """Repack PyTorch-layout parameters into the kernel layout (call once).

    weight_dtype=jnp.bfloat16 stores the matmul weights in bf16 (halves weight
    DMA on v6e/v7x); keep the f32 default on v5e.
    """
    backbones = params["backbones"]
    w_out, b_out = params["output"]
    E, in_features, H = backbones[0][0].shape
    w0, b0 = backbones[0]

    packed = {
        # first layer, shared (2-D) input: horizontal pack (Din, E*H)
        "w0_shared": jnp.transpose(w0, (1, 0, 2))
                        .reshape(in_features, E * H).astype(weight_dtype),
        # first layer, per-member (3-D) input: block-diagonal (E*Din, E*H)
        "w0_blockdiag": _block_diag(w0).astype(weight_dtype),
        "b0": b0.reshape(1, E * H).astype(jnp.float32),
        # hidden layers: block-diagonal (E*H, E*H), lane-packed bias
        "hidden": [(_block_diag(w).astype(weight_dtype),
                    b.reshape(1, E * H).astype(jnp.float32))
                   for (w, b) in backbones[1:]],
        # output layer stays per-member (block-diag would 7x its DMA)
        "w_out": w_out.astype(weight_dtype),     # (E, H, out_dim)
        "b_out": b_out.astype(jnp.float32),      # (E, 1, out_dim)
        "ensemble_size": E,
        "hidden_features": H,
        "in_features": in_features,
        "obs_dim": obs_dim,
        "num_bins": num_bins,
        "with_reward": bool(with_reward),
    }
    return packed


# -----------------------------------------------------------------------------
# Forward pass (single pallas_call, no per-call parameter work).
# -----------------------------------------------------------------------------
def discrete_ensemble_transition_forward(packed, obs_action):
    """Forward of Discrete_EnsembleTransition.

    obs_action: (B, obs+act) shared input, or (E, B, obs+act) per-member input.
    Returns logits of shape (E, B, num_bins, obs_dim + with_reward) — the
    tensor that parameterises the module's OneHotCategorical.
    """
    E = packed["ensemble_size"]
    H = packed["hidden_features"]
    out_dim = packed["w_out"].shape[-1]

    # obs_mean is None on a fresh module (and mode != 'normalize'), so the
    # input passes through un-normalised, exactly as in the PyTorch code.
    if obs_action.ndim == 2:
        x2 = obs_action.astype(jnp.float32)
        w0 = packed["w0_shared"]
    else:
        # Per-member input: pack the ensemble into the lane dim of x (tiny,
        # ~3 KB) so the same lane-packed kernel applies, using the
        # block-diagonal first-layer weight.
        e_, b_, d_ = obs_action.shape
        x2 = jnp.transpose(obs_action.astype(jnp.float32), (1, 0, 2)
                           ).reshape(b_, e_ * d_)
        w0 = packed["w0_blockdiag"]
    B = x2.shape[0]

    operands = [x2, w0, packed["b0"]]
    for (w, b) in packed["hidden"]:
        operands += [w, b]
    operands += [packed["w_out"], packed["b_out"]]
    n_backbone = 1 + len(packed["hidden"])

    # Advisory cost estimate for XLA's scheduler.
    flops = (2 * B * (w0.shape[0] * w0.shape[1]
                      + sum(w.shape[0] * w.shape[1]
                            for (w, _) in packed["hidden"]))
             + 2 * E * B * H * out_dim)
    transcendentals = n_backbone * B * E * H
    bytes_accessed = int(sum(op.size * op.dtype.itemsize for op in operands)
                         + E * B * out_dim * 4)

    kernel = functools.partial(
        _fused_mlp_kernel, n_backbone=n_backbone,
        ensemble_size=E, hidden_features=H)

    vmem = pl.BlockSpec(memory_space=pltpu.MemorySpace.VMEM)
    logits = pl.pallas_call(
        kernel,
        out_shape=jax.ShapeDtypeStruct((E, B, out_dim), jnp.float32),
        in_specs=[vmem] * len(operands),
        out_specs=vmem,
        cost_estimate=pl.CostEstimate(flops=int(flops),
                                      transcendentals=int(transcendentals),
                                      bytes_accessed=bytes_accessed),
    )(*operands)

    # Row-major metadata-only reshape, same as the PyTorch module.
    # TODO(synk): torch.distributions.OneHotCategorical has no Pallas
    # equivalent; we return the logits tensor that parameterises it.
    return logits.reshape(E, -1, packed["num_bins"],
                          packed["obs_dim"] + int(packed["with_reward"]))


# -----------------------------------------------------------------------------
# Parameter initialisation (matches EnsembleLinear.__init__ shapes/init).
# -----------------------------------------------------------------------------
def _trunc_normal(key, shape, std):
    # torch.nn.init.trunc_normal_(std=std) truncates at absolute bounds [-2, 2]
    lo, hi = -2.0 / std, 2.0 / std
    return std * jax.random.truncated_normal(key, lo, hi, shape, jnp.float32)


def init_params(key, obs_dim, action_dim, hidden_features, hidden_layers,
                ensemble_size, num_bins, with_reward=True):
    params = {"backbones": [], "output": None}
    in_dim = obs_dim + action_dim
    for i in range(hidden_layers):
        key, wk = jax.random.split(key)
        d_in = in_dim if i == 0 else hidden_features
        w = _trunc_normal(wk, (ensemble_size, d_in, hidden_features),
                          std=1.0 / (2.0 * d_in ** 0.5))
        b = jnp.zeros((ensemble_size, 1, hidden_features), jnp.float32)
        params["backbones"].append((w, b))
    out_dim = num_bins * (obs_dim + int(with_reward))
    key, wk = jax.random.split(key)
    w = _trunc_normal(wk, (ensemble_size, hidden_features, out_dim),
                      std=1.0 / (2.0 * hidden_features ** 0.5))
    b = jnp.zeros((ensemble_size, 1, out_dim), jnp.float32)
    params["output"] = (w, b)
    # max_logstd / min_logstd exist in the module but are unused in forward()
    params["max_logstd"] = jnp.ones((obs_dim + int(with_reward),), jnp.float32)
    params["min_logstd"] = -5.0 * jnp.ones((obs_dim + int(with_reward),),
                                           jnp.float32)
    return params


# -----------------------------------------------------------------------------
# Pure-JAX reference for correctness checking (high-precision einsums).
# -----------------------------------------------------------------------------
def _reference_forward(params, obs_action, *, obs_dim, num_bins,
                       with_reward=True):
    hp = jax.lax.Precision.HIGHEST
    output = obs_action
    for (w, b) in params["backbones"]:
        if output.ndim == 2:
            output = jnp.einsum('ij,bjk->bik', output, w, precision=hp)
        else:
            output = jnp.einsum('bij,bjk->bik', output, w, precision=hp)
        output = output + b
        output = output * jax.nn.sigmoid(output)
    w, b = params["output"]
    logits = jnp.einsum('bij,bjk->bik', output, w, precision=hp) + b
    E = w.shape[0]
    return logits.reshape(E, -1, num_bins, obs_dim + int(with_reward))


if __name__ == "__main__":
    obs_dim, action_dim = 11, 3
    hidden_features, hidden_layers = 32, 2
    ensemble_size, num_bins = 7, 30
    batch = 8

    key = jax.random.PRNGKey(0)
    pkey, bkey, xkey, x3key = jax.random.split(key, 4)
    params = init_params(pkey, obs_dim, action_dim, hidden_features,
                         hidden_layers, ensemble_size, num_bins,
                         with_reward=True)

    # The module initialises biases to zero; perturb them here so the test
    # actually exercises the bias packing / wiring.
    bkeys = jax.random.split(bkey, hidden_layers + 1)
    params["backbones"] = [
        (w, 0.1 * jax.random.normal(bkeys[i], b.shape, jnp.float32))
        for i, (w, b) in enumerate(params["backbones"])]
    wo, bo = params["output"]
    params["output"] = (wo, 0.1 * jax.random.normal(bkeys[-1], bo.shape,
                                                    jnp.float32))

    # One-time repack (everything the forward needs, nothing per-call).
    packed = pack_params(params, obs_dim=obs_dim, num_bins=num_bins,
                         with_reward=True)

    # --- 2-D input (shared across the ensemble, 'ij,bjk->bik' first layer) --
    obs_action = jax.random.normal(xkey, (batch, obs_dim + action_dim),
                                   jnp.float32)
    logits = jax.block_until_ready(
        discrete_ensemble_transition_forward(packed, obs_action))
    ref = _reference_forward(params, obs_action, obs_dim=obs_dim,
                             num_bins=num_bins, with_reward=True)
    assert logits.shape == (ensemble_size, batch, num_bins, obs_dim + 1), \
        logits.shape
    err2 = float(jnp.max(jnp.abs(logits - ref)))
    assert jnp.allclose(logits, ref, atol=5e-3, rtol=5e-3), err2

    # --- 3-D input (per-ensemble x, 'bij,bjk->bik' first layer) -------------
    obs_action3 = jax.random.normal(
        x3key, (ensemble_size, batch, obs_dim + action_dim), jnp.float32)
    logits3 = jax.block_until_ready(
        discrete_ensemble_transition_forward(packed, obs_action3))
    ref3 = _reference_forward(params, obs_action3, obs_dim=obs_dim,
                              num_bins=num_bins, with_reward=True)
    err3 = float(jnp.max(jnp.abs(logits3 - ref3)))
    assert jnp.allclose(logits3, ref3, atol=5e-3, rtol=5e-3), err3

    # --- bf16 weight *storage* (bandwidth option for v6e/v7x; keep f32 on
    # v5e).  Plumbing check only — quantify real logit error before enabling
    # bf16 in production (OneHotCategorical sampling is argmax-sensitive).
    packed_bf16 = pack_params(params, obs_dim=obs_dim, num_bins=num_bins,
                              with_reward=True, weight_dtype=jnp.bfloat16)
    logits_bf16 = jax.block_until_ready(
        discrete_ensemble_transition_forward(packed_bf16, obs_action))
    err_bf16 = float(jnp.max(jnp.abs(logits_bf16 - ref)))
    assert jnp.allclose(logits_bf16, ref, atol=5e-2, rtol=5e-2), err_bf16

    print("KERNEL_OK")
</pallas_src>

<mosaic_0001>
module attributes {stable_mosaic.version = 11 : i64} {
  func.func @_fused_mlp_kernel(%arg0: memref<8x14xf32, #tpu.memory_space<vmem>>, %arg1: memref<14x224xf32, #tpu.memory_space<vmem>>, %arg2: memref<1x224xf32, #tpu.memory_space<vmem>>, %arg3: memref<224x224xf32, #tpu.memory_space<vmem>>, %arg4: memref<1x224xf32, #tpu.memory_space<vmem>>, %arg5: memref<7x32x360xf32, #tpu.memory_space<vmem>>, %arg6: memref<7x1x360xf32, #tpu.memory_space<vmem>>, %arg7: memref<7x8x360xf32, #tpu.memory_space<vmem>>) attributes {dimension_semantics = [], scalar_prefetch = 0 : i64, scratch_operands = 0 : i64, tpu.core_type = #tpu.core_type<tc>} {
    %c0 = arith.constant 0 : index
    %c0_0 = arith.constant 0 : index
    %0 = vector.load %arg0[%c0, %c0_0] : memref<8x14xf32, #tpu.memory_space<vmem>>, vector<8x14xf32>
    %c0_1 = arith.constant 0 : index
    %c0_2 = arith.constant 0 : index
    %1 = vector.load %arg1[%c0_1, %c0_2] : memref<14x224xf32, #tpu.memory_space<vmem>>, vector<14x224xf32>
    %c0_3 = arith.constant 0 : index
    %c0_4 = arith.constant 0 : index
    %2 = vector.load %arg2[%c0_3, %c0_4] : memref<1x224xf32, #tpu.memory_space<vmem>>, vector<1x224xf32>
    %cst = arith.constant dense<0.000000e+00> : vector<8x224xf32>
    %3 = tpu.matmul %0, %1, %cst {dimension_numbers = #tpu.dot_dimension_numbers<[1], [0], [0], [1], [0, 0, 1, 1], [], []>} : vector<8x14xf32>, vector<14x224xf32>, vector<8x224xf32> -> vector<8x224xf32>
    %4 = vector.broadcast %2 : vector<1x224xf32> to vector<8x224xf32>
    %5 = arith.addf %3, %4 : vector<8x224xf32>
    %6 = arith.negf %5 : vector<8x224xf32>
    %7 = math.exp %6 : vector<8x224xf32>
    %cst_5 = arith.constant 1.000000e+00 : f32
    %8 = vector.broadcast %cst_5 : f32 to vector<8x224xf32>
    %9 = arith.addf %8, %7 : vector<8x224xf32>
    %10 = arith.divf %8, %9 : vector<8x224xf32>
    %11 = arith.mulf %5, %10 : vector<8x224xf32>
    %c0_6 = arith.constant 0 : index
    %c0_7 = arith.constant 0 : index
    %12 = vector.load %arg3[%c0_6, %c0_7] : memref<224x224xf32, #tpu.memory_space<vmem>>, vector<224x224xf32>
    %c0_8 = arith.constant 0 : index
    %c0_9 = arith.constant 0 : index
    %13 = vector.load %arg4[%c0_8, %c0_9] : memref<1x224xf32, #tpu.memory_space<vmem>>, vector<1x224xf32>
    %cst_10 = arith.constant dense<0.000000e+00> : vector<8x224xf32>
    %14 = tpu.matmul %11, %12, %cst_10 {dimension_numbers = #tpu.dot_dimension_numbers<[1], [0], [0], [1], [0, 0, 1, 1], [], []>} : vector<8x224xf32>, vector<224x224xf32>, vector<8x224xf32> -> vector<8x224xf32>
    %15 = vector.broadcast %13 : vector<1x224xf32> to vector<8x224xf32>
    %16 = arith.addf %14, %15 : vector<8x224xf32>
    %17 = arith.negf %16 : vector<8x224xf32>
    %18 = math.exp %17 : vector<8x224xf32>
    %cst_11 = arith.constant 1.000000e+00 : f32
    %19 = vector.broadcast %cst_11 : f32 to vector<8x224xf32>
    %20 = arith.addf %19, %18 : vector<8x224xf32>
    %21 = arith.divf %19, %20 : vector<8x224xf32>
    %22 = arith.mulf %16, %21 : vector<8x224xf32>
    %23 = vector.extract_strided_slice %22 {offsets = [0, 0], sizes = [8, 32], strides = [1, 1]} : vector<8x224xf32> to vector<8x32xf32>
    %c0_12 = arith.constant 0 : index
    %c0_13 = arith.constant 0 : index
    %c0_14 = arith.constant 0 : index
    %24 = vector.load %arg5[%c0_12, %c0_13, %c0_14] : memref<7x32x360xf32, #tpu.memory_space<vmem>>, vector<1x32x360xf32>
    %25 = vector.shape_cast %24 : vector<1x32x360xf32> to vector<32x360xf32>
    %cst_15 = arith.constant dense<0.000000e+00> : vector<8x360xf32>
    %26 = tpu.matmul %23, %25, %cst_15 {dimension_numbers = #tpu.dot_dimension_numbers<[1], [0], [0], [1], [0, 0, 1, 1], [], []>} : vector<8x32xf32>, vector<32x360xf32>, vector<8x360xf32> -> vector<8x360xf32>
    %c0_16 = arith.constant 0 : index
    %c0_17 = arith.constant 0 : index
    %c0_18 = arith.constant 0 : index
    %27 = vector.load %arg6[%c0_16, %c0_17, %c0_18] : memref<7x1x360xf32, #tpu.memory_space<vmem>>, vector<1x1x360xf32>
    %28 = vector.shape_cast %27 : vector<1x1x360xf32> to vector<1x360xf32>
    %29 = vector.broadcast %28 : vector<1x360xf32> to vector<8x360xf32>
    %30 = arith.addf %26, %29 : vector<8x360xf32>
    %c0_19 = arith.constant 0 : index
    %c0_20 = arith.constant 0 : index
    %c0_21 = arith.constant 0 : index
    %31 = vector.load %arg7[%c0_19, %c0_20, %c0_21] : memref<7x8x360xf32, #tpu.memory_space<vmem>>, vector<1x8x360xf32>
    %32 = vector.shape_cast %31 : vector<1x8x360xf32> to vector<8x360xf32>
    %33 = vector.shape_cast %30 : vector<8x360xf32> to vector<1x8x360xf32>
    tpu.vector_store %arg7[%c0_19, %c0_20, %c0_21], %33 {strides = array<i32>} : memref<7x8x360xf32, #tpu.memory_space<vmem>>, vector<1x8x360xf32>,
    %34 = vector.extract_strided_slice %22 {offsets = [0, 32], sizes = [8, 32], strides = [1, 1]} : vector<8x224xf32> to vector<8x32xf32>
    %c1 = arith.constant 1 : index
    %c0_22 = arith.constant 0 : index
    %c0_23 = arith.constant 0 : index
    %35 = vector.load %arg5[%c1, %c0_22, %c0_23] : memref<7x32x360xf32, #tpu.memory_space<vmem>>, vector<1x32x360xf32>
    %36 = vector.shape_cast %35 : vector<1x32x360xf32> to vector<32x360xf32>
    %cst_24 = arith.constant dense<0.000000e+00> : vector<8x360xf32>
    %37 = tpu.matmul %34, %36, %cst_24 {dimension_numbers = #tpu.dot_dimension_numbers<[1], [0], [0], [1], [0, 0, 1, 1], [], []>} : vector<8x32xf32>, vector<32x360xf32>, vector<8x360xf32> -> vector<8x360xf32>
    %c1_25 = arith.constant 1 : index
    %c0_26 = arith.constant 0 : index
    %c0_27 = arith.constant 0 : index
    %38 = vector.load %arg6[%c1_25, %c0_26, %c0_27] : memref<7x1x360xf32, #tpu.memory_space<vmem>>, vector<1x1x360xf32>
    %39 = vector.shape_cast %38 : vector<1x1x360xf32> to vector<1x360xf32>
    %40 = vector.broadcast %39 : vector<1x360xf32> to vector<8x360xf32>
    %41 = arith.addf %37, %40 : vector<8x360xf32>
    %c1_28 = arith.constant 1 : index
    %c0_29 = arith.constant 0 : index
    %c0_30 = arith.constant 0 : index
    %42 = vector.load %arg7[%c1_28, %c0_29, %c0_30] : memref<7x8x360xf32, #tpu.memory_space<vmem>>, vector<1x8x360xf32>
    %43 = vector.shape_cast %42 : vector<1x8x360xf32> to vector<8x360xf32>
    %44 = vector.shape_cast %41 : vector<8x360xf32> to vector<1x8x360xf32>
    tpu.vector_store %arg7[%c1_28, %c0_29, %c0_30], %44 {strides = array<i32>} : memref<7x8x360xf32, #tpu.memory_space<vmem>>, vector<1x8x360xf32>,
    %45 = vector.extract_strided_slice %22 {offsets = [0, 64], sizes = [8, 32], strides = [1, 1]} : vector<8x224xf32> to vector<8x32xf32>
    %c2 = arith.constant 2 : index
    %c0_31 = arith.constant 0 : index
    %c0_32 = arith.constant 0 : index
    %46 = vector.load %arg5[%c2, %c0_31, %c0_32] : memref<7x32x360xf32, #tpu.memory_space<vmem>>, vector<1x32x360xf32>
    %47 = vector.shape_cast %46 : vector<1x32x360xf32> to vector<32x360xf32>
    %cst_33 = arith.constant dense<0.000000e+00> : vector<8x360xf32>
    %48 = tpu.matmul %45, %47, %cst_33 {dimension_numbers = #tpu.dot_dimension_numbers<[1], [0], [0], [1], [0, 0, 1, 1], [], []>} : vector<8x32xf32>, vector<32x360xf32>, vector<8x360xf32> -> vector<8x360xf32>
    %c2_34 = arith.constant 2 : index
    %c0_35 = arith.constant 0 : index
    %c0_36 = arith.constant 0 : index
    %49 = vector.load %arg6[%c2_34, %c0_35, %c0_36] : memref<7x1x360xf32, #tpu.memory_space<vmem>>, vector<1x1x360xf32>
    %50 = vector.shape_cast %49 : vector<1x1x360xf32> to vector<1x360xf32>
    %51 = vector.broadcast %50 : vector<1x360xf32> to vector<8x360xf32>
    %52 = arith.addf %48, %51 : vector<8x360xf32>
    %c2_37 = arith.constant 2 : index
    %c0_38 = arith.constant 0 : index
    %c0_39 = arith.constant 0 : index
    %53 = vector.load %arg7[%c2_37, %c0_38, %c0_39] : memref<7x8x360xf32, #tpu.memory_space<vmem>>, vector<1x8x360xf32>
    %54 = vector.shape_cast %53 : vector<1x8x360xf32> to vector<8x360xf32>
    %55 = vector.shape_cast %52 : vector<8x360xf32> to vector<1x8x360xf32>
    tpu.vector_store %arg7[%c2_37, %c0_38, %c0_39], %55 {strides = array<i32>} : memref<7x8x360xf32, #tpu.memory_space<vmem>>, vector<1x8x360xf32>,
    %56 = vector.extract_strided_slice %22 {offsets = [0, 96], sizes = [8, 32], strides = [1, 1]} : vector<8x224xf32> to vector<8x32xf32>
    %c3 = arith.constant 3 : index
    %c0_40 = arith.constant 0 : index
    %c0_41 = arith.constant 0 : index
    %57 = vector.load %arg5[%c3, %c0_40, %c0_41] : memref<7x32x360xf32, #tpu.memory_space<vmem>>, vector<1x32x360xf32>
    %58 = vector.shape_cast %57 : vector<1x32x360xf32> to vector<32x360xf32>
    %cst_42 = arith.constant dense<0.000000e+00> : vector<8x360xf32>
    %59 = tpu.matmul %56, %58, %cst_42 {dimension_numbers = #tpu.dot_dimension_numbers<[1], [0], [0], [1], [0, 0, 1, 1], [], []>} : vector<8x32xf32>, vector<32x360xf32>, vector<8x360xf32> -> vector<8x360xf32>
    %c3_43 = arith.constant 3 : index
    %c0_44 = arith.constant 0 : index
    %c0_45 = arith.constant 0 : index
    %60 = vector.load %arg6[%c3_43, %c0_44, %c0_45] : memref<7x1x360xf32, #tpu.memory_space<vmem>>, vector<1x1x360xf32>
    %61 = vector.shape_cast %60 : vector<1x1x360xf32> to vector<1x360xf32>
    %62 = vector.broadcast %61 : vector<1x360xf32> to vector<8x360xf32>
    %63 = arith.addf %59, %62 : vector<8x360xf32>
    %c3_46 = arith.constant 3 : index
    %c0_47 = arith.constant 0 : index
    %c0_48 = arith.constant 0 : index
    %64 = vector.load %arg7[%c3_46, %c0_47, %c0_48] : memref<7x8x360xf32, #tpu.memory_space<vmem>>, vector<1x8x360xf32>
    %65 = vector.shape_cast %64 : vector<1x8x360xf32> to vector<8x360xf32>
    %66 = vector.shape_cast %63 : vector<8x360xf32> to vector<1x8x360xf32>
    tpu.vector_store %arg7[%c3_46, %c0_47, %c0_48], %66 {strides = array<i32>} : memref<7x8x360xf32, #tpu.memory_space<vmem>>, vector<1x8x360xf32>,
    %67 = vector.extract_strided_slice %22 {offsets = [0, 128], sizes = [8, 32], strides = [1, 1]} : vector<8x224xf32> to vector<8x32xf32>
    %c4 = arith.constant 4 : index
    %c0_49 = arith.constant 0 : index
    %c0_50 = arith.constant 0 : index
    %68 = vector.load %arg5[%c4, %c0_49, %c0_50] : memref<7x32x360xf32, #tpu.memory_space<vmem>>, vector<1x32x360xf32>
    %69 = vector.shape_cast %68 : vector<1x32x360xf32> to vector<32x360xf32>
    %cst_51 = arith.constant dense<0.000000e+00> : vector<8x360xf32>
    %70 = tpu.matmul %67, %69, %cst_51 {dimension_numbers = #tpu.dot_dimension_numbers<[1], [0], [0], [1], [0, 0, 1, 1], [], []>} : vector<8x32xf32>, vector<32x360xf32>, vector<8x360xf32> -> vector<8x360xf32>
    %c4_52 = arith.constant 4 : index
    %c0_53 = arith.constant 0 : index
    %c0_54 = arith.constant 0 : index
    %71 = vector.load %arg6[%c4_52, %c0_53, %c0_54] : memref<7x1x360xf32, #tpu.memory_space<vmem>>, vector<1x1x360xf32>
    %72 = vector.shape_cast %71 : vector<1x1x360xf32> to vector<1x360xf32>
    %73 = vector.broadcast %72 : vector<1x360xf32> to vector<8x360xf32>
    %74 = arith.addf %70, %73 : vector<8x360xf32>
    %c4_55 = arith.constant 4 : index
    %c0_56 = arith.constant 0 : index
    %c0_57 = arith.constant 0 : index
    %75 = vector.load %arg7[%c4_55, %c0_56, %c0_57] : memref<7x8x360xf32, #tpu.memory_space<vmem>>, vector<1x8x360xf32>
    %76 = vector.shape_cast %75 : vector<1x8x360xf32> to vector<8x360xf32>
    %77 = vector.shape_cast %74 : vector<8x360xf32> to vector<1x8x360xf32>
    tpu.vector_store %arg7[%c4_55, %c0_56, %c0_57], %77 {strides = array<i32>} : memref<7x8x360xf32, #tpu.memory_space<vmem>>, vector<1x8x360xf32>,
    %78 = vector.extract_strided_slice %22 {offsets = [0, 160], sizes = [8, 32], strides = [1, 1]} : vector<8x224xf32> to vector<8x32xf32>
    %c5 = arith.constant 5 : index
    %c0_58 = arith.constant 0 : index
    %c0_59 = arith.constant 0 : index
    %79 = vector.load %arg5[%c5, %c0_58, %c0_59] : memref<7x32x360xf32, #tpu.memory_space<vmem>>, vector<1x32x360xf32>
    %80 = vector.shape_cast %79 : vector<1x32x360xf32> to vector<32x360xf32>
    %cst_60 = arith.constant dense<0.000000e+00> : vector<8x360xf32>
    %81 = tpu.matmul %78, %80, %cst_60 {dimension_numbers = #tpu.dot_dimension_numbers<[1], [0], [0], [1], [0, 0, 1, 1], [], []>} : vector<8x32xf32>, vector<32x360xf32>, vector<8x360xf32> -> vector<8x360xf32>
    %c5_61 = arith.constant 5 : index
    %c0_62 = arith.constant 0 : index
    %c0_63 = arith.constant 0 : index
    %82 = vector.load %arg6[%c5_61, %c0_62, %c0_63] : memref<7x1x360xf32, #tpu.memory_space<vmem>>, vector<1x1x360xf32>
    %83 = vector.shape_cast %82 : vector<1x1x360xf32> to vector<1x360xf32>
    %84 = vector.broadcast %83 : vector<1x360xf32> to vector<8x360xf32>
    %85 = arith.addf %81, %84 : vector<8x360xf32>
    %c5_64 = arith.constant 5 : index
    %c0_65 = arith.constant 0 : index
    %c0_66 = arith.constant 0 : index
    %86 = vector.load %arg7[%c5_64, %c0_65, %c0_66] : memref<7x8x360xf32, #tpu.memory_space<vmem>>, vector<1x8x360xf32>
    %87 = vector.shape_cast %86 : vector<1x8x360xf32> to vector<8x360xf32>
    %88 = vector.shape_cast %85 : vector<8x360xf32> to vector<1x8x360xf32>
    tpu.vector_store %arg7[%c5_64, %c0_65, %c0_66], %88 {strides = array<i32>} : memref<7x8x360xf32, #tpu.memory_space<vmem>>, vector<1x8x360xf32>,
    %89 = vector.extract_strided_slice %22 {offsets = [0, 192], sizes = [8, 32], strides = [1, 1]} : vector<8x224xf32> to vector<8x32xf32>
    %c6 = arith.constant 6 : index
    %c0_67 = arith.constant 0 : index
    %c0_68 = arith.constant 0 : index
    %90 = vector.load %arg5[%c6, %c0_67, %c0_68] : memref<7x32x360xf32, #tpu.memory_space<vmem>>, vector<1x32x360xf32>
    %91 = vector.shape_cast %90 : vector<1x32x360xf32> to vector<32x360xf32>
    %cst_69 = arith.constant dense<0.000000e+00> : vector<8x360xf32>
    %92 = tpu.matmul %89, %91, %cst_69 {dimension_numbers = #tpu.dot_dimension_numbers<[1], [0], [0], [1], [0, 0, 1, 1], [], []>} : vector<8x32xf32>, vector<32x360xf32>, vector<8x360xf32> -> vector<8x360xf32>
    %c6_70 = arith.constant 6 : index
    %c0_71 = arith.constant 0 : index
    %c0_72 = arith.constant 0 : index
    %93 = vector.load %arg6[%c6_70, %c0_71, %c0_72] : memref<7x1x360xf32, #tpu.memory_space<vmem>>, vector<1x1x360xf32>
    %94 = vector.shape_cast %93 : vector<1x1x360xf32> to vector<1x360xf32>
    %95 = vector.broadcast %94 : vector<1x360xf32> to vector<8x360xf32>
    %96 = arith.addf %92, %95 : vector<8x360xf32>
    %c6_73 = arith.constant 6 : index
    %c0_74 = arith.constant 0 : index
    %c0_75 = arith.constant 0 : index
    %97 = vector.load %arg7[%c6_73, %c0_74, %c0_75] : memref<7x8x360xf32, #tpu.memory_space<vmem>>, vector<1x8x360xf32>
    %98 = vector.shape_cast %97 : vector<1x8x360xf32> to vector<8x360xf32>
    %99 = vector.shape_cast %96 : vector<8x360xf32> to vector<1x8x360xf32>
    tpu.vector_store %arg7[%c6_73, %c0_74, %c0_75], %99 {strides = array<i32>} : memref<7x8x360xf32, #tpu.memory_space<vmem>>, vector<1x8x360xf32>,
    return
  }
}

</mosaic_0001>

<llo_original>
// kernel: tpu_custom_call.1
$region0: #{tpu_custom_call.1}
  #allocation0 [shape = 'u32[]', space=smem, size = 0x4, offset = 0x4, fixed_abs, tag = 'smem constant byte address 0x4 - core index']
  #allocation1 [shape = 'u32[144,128]{1,0:T(1,128)}', space=vmem, size = 0x12000, scoped, tag = 'internal scratch']
  %s0 = inlined_call_operand.hbm [shape: f32[8,14], index: 0, kind: input, shape index: {}]
  %s1 = inlined_call_operand.hbm [shape: f32[14,224], index: 1, kind: input, shape index: {}]
  %s2 = inlined_call_operand.hbm [shape: f32[1,224], index: 2, kind: input, shape index: {}]
  %s3 = inlined_call_operand.hbm [shape: f32[224,224], index: 3, kind: input, shape index: {}]
  %s4 = inlined_call_operand.hbm [shape: f32[1,224], index: 4, kind: input, shape index: {}]
  %s5 = inlined_call_operand.hbm [shape: f32[7,32,360], index: 5, kind: input, shape index: {}]
  %s6 = inlined_call_operand.vmem [shape: f32[7,1,360], index: 6, kind: input, shape index: {}]
  %s7 = inlined_call_operand.hbm [shape: f32[7,8,360], index: 7, kind: output, shape index: {}]
  %s8 = sld [smem:[#allocation0]]
  $region62: #{tpu_custom_call.1} parent=0
    _
  %s10 = ssub.s32 1, %s8
  %s11 = scalar_select 0, %s10, %s8
  $region1: #{tpu_custom_call.1} parent=0
    #allocation2 [shape = 'u8[4096]{0}', space=vmem, size = 0x1000, scoped, tag = 'input window, operand 0, single buffered']
    #allocation3 [shape = 's32[1]{0}', space=sflag, size = 0x4, scoped, tag = 'scoped memory for tpu_custom_call.1']
    #allocation4 [shape = 's32[1]{0}', space=sflag, size = 0x4, scoped, tag = 'scoped memory for tpu_custom_call.1']
    #allocation5 [shape = 'u8[16384]{0}', space=vmem, size = 0x4000, scoped, tag = 'input window, operand 1, single buffered']
    #allocation6 [shape = 's32[1]{0}', space=sflag, size = 0x4, scoped, tag = 'scoped memory for tpu_custom_call.1']
    #allocation7 [shape = 'u8[1024]{0}', space=vmem, size = 0x400, scoped, tag = 'input window, operand 2, single buffered']
    #allocation8 [shape = 'u8[229376]{0}', space=vmem, size = 0x38000, scoped, tag = 'input window, operand 3, single buffered']
    #allocation9 [shape = 's32[1]{0}', space=sflag, size = 0x4, scoped, tag = 'scoped memory for tpu_custom_call.1']
    #allocation10 [shape = 'u8[1024]{0}', space=vmem, size = 0x400, scoped, tag = 'input window, operand 4, single buffered']
    #allocation11 [shape = 'u8[344064]{0}', space=vmem, size = 0x54000, scoped, tag = 'input window, operand 5, single buffered']
    #allocation12 [shape = 's32[1]{0}', space=sflag, size = 0x4, scoped, tag = 'scoped memory for tpu_custom_call.1']
    #allocation13 [shape = 'u8[86016]{0}', space=vmem, size = 0x15000, scoped, tag = 'output window, operand 0, single buffered']
    %12 = vsyncpa [#allocation3], 0
    %13 = vsyncpa [#allocation6], 0
    %14 = vsyncpa [#allocation9], 0
    %15 = vsyncpa [#allocation12], 0
    %16 = vsyncpa [#allocation4], 0
    // Predicated region
    $region2: #{tpu_custom_call.1} parent=1 // pred_check
      _
    $region3: #{tpu_custom_call.1} parent=1 // pred_check_branch
      %18 = sbr.rel (0) target = $region5
    $region4: #{tpu_custom_call.1} parent=1 // pred_region
      %s20 = ssub.s32 128, 128
      %21 = vsyncadd [#allocation3], %s20
      %s23 = sshll.u32 [#allocation2], 4
      %s24 = int_to_ptr.vmem [resolvable:$true] %s23
      %26 = dma.hbm_to_vmem [thread:$0]  %s0, 128, %s24, [#allocation3]
    $region5: #{tpu_custom_call.1} parent=1 // pred_fallthru
      _
    // Predicated region
    $region6: #{tpu_custom_call.1} parent=1 // pred_check
      _
    $region7: #{tpu_custom_call.1} parent=1 // pred_check_branch
      %28 = sbr.rel (0) target = $region9
    $region8: #{tpu_custom_call.1} parent=1 // pred_region
      %s30 = ssub.s32 512, 512
      %31 = vsyncadd [#allocation6], %s30
      %s32 = sshll.u32 [#allocation5], 4
      %s33 = int_to_ptr.vmem [resolvable:$true] %s32
      %38 = dma.hbm_to_vmem [thread:$0]  %s1, 512, %s33, [#allocation6], 256, 256, 16
    $region9: #{tpu_custom_call.1} parent=1 // pred_fallthru
      _
    // Predicated region
    $region10: #{tpu_custom_call.1} parent=1 // pred_check
      _
    $region11: #{tpu_custom_call.1} parent=1 // pred_check_branch
      %40 = sbr.rel (0) target = $region13
    $region12: #{tpu_custom_call.1} parent=1 // pred_region
      %s42 = ssub.s32 32, 32
      %43 = vsyncadd [#allocation6], %s42
      %s45 = sshll.u32 [#allocation7], 4
      %s46 = int_to_ptr.vmem [resolvable:$true] %s45
      %48 = dma.hbm_to_vmem [thread:$0]  %s2, 32, %s46, [#allocation6]
    $region13: #{tpu_custom_call.1} parent=1 // pred_fallthru
      _
    // Predicated region
    $region14: #{tpu_custom_call.1} parent=1 // pred_check
      _
    $region15: #{tpu_custom_call.1} parent=1 // pred_check_branch
      %50 = sbr.rel (0) target = $region17
    $region16: #{tpu_custom_call.1} parent=1 // pred_region
      %s52 = ssub.s32 7168, 7168
      %53 = vsyncadd [#allocation9], %s52
      %s54 = sshll.u32 [#allocation8], 4
      %s55 = int_to_ptr.vmem [resolvable:$true] %s54
      %60 = dma.hbm_to_vmem [thread:$0]  %s3, 7168, %s55, [#allocation9], 256, 256, 16
    $region17: #{tpu_custom_call.1} parent=1 // pred_fallthru
      _
    // Predicated region
    $region18: #{tpu_custom_call.1} parent=1 // pred_check
      _
    $region19: #{tpu_custom_call.1} parent=1 // pred_check_branch
      %62 = sbr.rel (0) target = $region21
    $region20: #{tpu_custom_call.1} parent=1 // pred_region
      %s64 = ssub.s32 32, 32
      %65 = vsyncadd [#allocation9], %s64
      %s67 = sshll.u32 [#allocation10], 4
      %s68 = int_to_ptr.vmem [resolvable:$true] %s67
      %70 = dma.hbm_to_vmem [thread:$0]  %s4, 32, %s68, [#allocation9]
    $region21: #{tpu_custom_call.1} parent=1 // pred_fallthru
      _
    // Predicated region
    $region22: #{tpu_custom_call.1} parent=1 // pred_check
      _
    $region23: #{tpu_custom_call.1} parent=1 // pred_check_branch
      %72 = sbr.rel (0) target = $region25
    $region24: #{tpu_custom_call.1} parent=1 // pred_region
      %s74 = ssub.s32 10752, 10752
      %75 = vsyncadd [#allocation12], %s74
      %s76 = sshll.u32 [#allocation11], 4
      %s77 = int_to_ptr.vmem [resolvable:$true] %s76
      %82 = dma.hbm_to_vmem [thread:$0]  %s5, 10752, %s77, [#allocation12], 384, 384, 24
    $region25: #{tpu_custom_call.1} parent=1 // pred_fallthru
      _
    // Predicated region
    $region26: #{tpu_custom_call.1} parent=1 // pred_check
      _
    $region27: #{tpu_custom_call.1} parent=1 // pred_check_branch
      %84 = sbr.rel (0) target = $region29
    $region28: #{tpu_custom_call.1} parent=1 // pred_region
      _
    $region29: #{tpu_custom_call.1} parent=1 // pred_fallthru
      _
    // Predicated region
    $region30: #{tpu_custom_call.1} parent=1 // pred_check
      _
    $region31: #{tpu_custom_call.1} parent=1 // pred_check_branch
      %86 = sbr.rel (0) target = $region33
    $region32: #{tpu_custom_call.1} parent=1 // pred_region
      %87 = dma.done [#allocation3], 128
    $region33: #{tpu_custom_call.1} parent=1 // pred_fallthru
      _
    // Predicated region
    $region34: #{tpu_custom_call.1} parent=1 // pred_check
      _
    $region35: #{tpu_custom_call.1} parent=1 // pred_check_branch
      %89 = sbr.rel (0) target = $region37
    $region36: #{tpu_custom_call.1} parent=1 // pred_region
      %90 = dma.done [#allocation6], 512
    $region37: #{tpu_custom_call.1} parent=1 // pred_fallthru
      _
    // Predicated region
    $region38: #{tpu_custom_call.1} parent=1 // pred_check
      _
    $region39: #{tpu_custom_call.1} parent=1 // pred_check_branch
      %92 = sbr.rel (0) target = $region41
    $region40: #{tpu_custom_call.1} parent=1 // pred_region
      %93 = dma.done [#allocation6], 32
    $region41: #{tpu_custom_call.1} parent=1 // pred_fallthru
      _
    // Predicated region
    $region42: #{tpu_custom_call.1} parent=1 // pred_check
      _
    $region43: #{tpu_custom_call.1} parent=1 // pred_check_branch
      %95 = sbr.rel (0) target = $region45
    $region44: #{tpu_custom_call.1} parent=1 // pred_region
      %96 = dma.done [#allocation9], 7168
    $region45: #{tpu_custom_call.1} parent=1 // pred_fallthru
      _
    // Predicated region
    $region46: #{tpu_custom_call.1} parent=1 // pred_check
      _
    $region47: #{tpu_custom_call.1} parent=1 // pred_check_branch
      %98 = sbr.rel (0) target = $region49
    $region48: #{tpu_custom_call.1} parent=1 // pred_region
      %99 = dma.done [#allocation9], 32
    $region49: #{tpu_custom_call.1} parent=1 // pred_fallthru
      _
    // Predicated region
    $region50: #{tpu_custom_call.1} parent=1 // pred_check
      _
    $region51: #{tpu_custom_call.1} parent=1 // pred_check_branch
      %101 = sbr.rel (0) target = $region53
    $region52: #{tpu_custom_call.1} parent=1 // pred_region
      %102 = dma.done [#allocation12], 10752
    $region53: #{tpu_custom_call.1} parent=1 // pred_fallthru
      _
    %v103 = vld [vmem:[#allocation2] sm:$0xff]
    %v104 = vld [vmem:[#allocation5] sm:$0xff]
    %v105 = vld [vmem:[#allocation5 + $0x8] sm:$0xff]
    %v106 = vld [vmem:[#allocation5 + $0x10] sm:$0x3f]
    %v107 = vld [vmem:[#allocation5 + $0x18] sm:$0x3f]
    %v108 = vld [vmem:[#allocation7] sm:$0x3]
    %v110 = vlaneseq
    %v111 = vshrl.u32 %v110, 7
    %v112 = vsub.s32 0, %v111
    %v113 = vrot.slane %v108, %v112
    %v114 = vlaneseq
    %v115 = vshrl.u32 %v114, 7
    %v116 = vsub.s32 1, %v115
    %v117 = vrot.slane %v108, %v116
    %vm120 = vcmask 113664
    %v122 = vsel %vm120, %v103, 0
    %vm124 = vcmask 1045504
    %v126 = vsel %vm124, %v106, 0
    %v129 = vsel %vm124, %v107, 0
    %131 = vmatprep.subr.mxu0 %v105
    %132 = vmatpush1.msra.mxu0 %v104
    %133 = vmatprep.subr.mxu0 %v129
    %134 = vmatpush1.msra.mxu0 %v126
    %135 = vmatprep.subr.mxu0 0.0
    %136 = vmatpush1.msra.mxu0 0.0
    %137 = vmatprep.subr.mxu0 0.0
    %138 = vmatpush1.msra.mxu0 0.0
    %139 = vmatprep.subr.mxu0 0.0
    %140 = vmatpush1.msra.mxu0 0.0
    %141 = vmatprep.subr.mxu0 0.0
    %142 = vmatpush1.msra.mxu0 0.0
    %143 = vmatprep.subr.mxu0 0.0
    %144 = vmatpush1.msra.mxu0 0.0
    %145 = vmatprep.subr.mxu0 0.0
    %146 = vmatpush1.msra.mxu0 0.0
    %147 = vmatprep.subr.mxu0 0.0
    %148 = vmatpush1.msra.mxu0 0.0
    %149 = vmatprep.subr.mxu0 0.0
    %150 = vmatpush1.msra.mxu0 0.0
    %151 = vmatprep.subr.mxu0 0.0
    %152 = vmatpush1.msra.mxu0 0.0
    %153 = vmatprep.subr.mxu0 0.0
    %154 = vmatpush1.msra.mxu0 0.0
    %155 = vmatprep.subr.mxu0 0.0
    %156 = vmatpush1.msra.mxu0 0.0
    %157 = vmatprep.subr.mxu0 0.0
    %158 = vmatpush1.msra.mxu0 0.0
    %159 = vmatprep.subr.mxu0 0.0
    %160 = vmatpush1.msra.mxu0 0.0
    %161 = vmatprep.subr.mxu0 0.0
    %162 = vmatpush1.msra.mxu0 0.0
    %163 = vmatprep.subr.mxu0 0.0
    %164 = vmatpush1.msra.mxu0 0.0
    %165 = vmatprep.subr.mxu0 0.0
    %166 = vmatpush1.msra.mxu0 0.0
    %167 = vmatprep.subr.mxu0 0.0
    %168 = vmatpush1.msra.mxu0 0.0
    %169 = vmatprep.subr.mxu0 0.0
    %170 = vmatpush1.msra.mxu0 0.0
    %171 = vmatprep.subr.mxu0 0.0
    %172 = vmatpush1.msra.mxu0 0.0
    %173 = vmatprep.subr.mxu0 0.0
    %174 = vmatpush1.msra.mxu0 0.0
    %175 = vmatprep.subr.mxu0 0.0
    %176 = vmatpush1.msra.mxu0 0.0
    %177 = vmatprep.subr.mxu0 0.0
    %178 = vmatpush1.msra.mxu0 0.0
    %179 = vmatprep.subr.mxu0 0.0
    %180 = vmatpush1.msra.mxu0 0.0
    %181 = vmatprep.subr.mxu0 0.0
    %182 = vmatpush1.msra.mxu0 0.0
    %183 = vmatprep.subr.mxu0 0.0
    %184 = vmatpush1.msra.mxu0 0.0
    %185 = vmatprep.subr.mxu0 0.0
    %186 = vmatpush1.msra.mxu0 0.0
    %187 = vmatprep.subr.mxu0 0.0
    %188 = vmatpush1.msra.mxu0 0.0
    %189 = vmatprep.subr.mxu0 0.0
    %190 = vmatpush1.msra.mxu0 0.0
    %191 = vmatprep.subr.mxu0 0.0
    %192 = vmatpush1.msra.mxu0 0.0
    %193 = vmatprep.subr.mxu0 0.0
    %194 = vmatpush1.msra.mxu0 0.0
    %195 = vmatprep.mubr.f32.mxu0 0.0
    %196 = vmatmul.mubr.f32.gmra.mrb[0].mxu0 %v122
    %v197 = vpop.f32.mrb[0].mxu0
    %v198 = vadd.f32 %v113, %v197
    %v199 = vpop.f32.mrb[0].mxu0
    %v200 = vadd.f32 %v117, %v199
    %201 = vdwg.mxu0
    %v202 = vxor.u32 %v198, 2147483648
    %v203 = vxor.u32 %v200, 2147483648
    %v204 = vmul.f32 %v202, 1.442695
    %v205 = vpow.pop %v204
    %v206 = vmul.f32 %v203, 1.442695
    %v207 = vpow.pop %v206
    %v208 = vadd.f32 %v205, 1.0
    %v209 = vadd.f32 %v207, 1.0
    %v210 = vrcp.pop %v208
    %v211 = vmul.f32 1.0, %v210
    %v212 = vrcp.pop %v209
    %v213 = vmul.f32 1.0, %v212
    %v214 = vmul.f32 %v198, %v211
    %v215 = vmul.f32 %v200, %v213
    %v216 = vld [vmem:[#allocation8] sm:$0xff]
    %v217 = vld [vmem:[#allocation8 + $0x8] sm:$0xff]
    %v218 = vld [vmem:[#allocation8 + $0x10] sm:$0xff]
    %v219 = vld [vmem:[#allocation8 + $0x18] sm:$0xff]
    %v220 = vld [vmem:[#allocation8 + $0x20] sm:$0xff]
    %v221 = vld [vmem:[#allocation8 + $0x28] sm:$0xff]
    %v222 = vld [vmem:[#allocation8 + $0x30] sm:$0xff]
    %v223 = vld [vmem:[#allocation8 + $0x38] sm:$0xff]
    %v224 = vld [vmem:[#allocation8 + $0x40] sm:$0xff]
    %v225 = vld [vmem:[#allocation8 + $0x48] sm:$0xff]
    %v226 = vld [vmem:[#allocation8 + $0x50] sm:$0xff]
    %v227 = vld [vmem:[#allocation8 + $0x58] sm:$0xff]
    %v228 = vld [vmem:[#allocation8 + $0x60] sm:$0xff]
    %v229 = vld [vmem:[#allocation8 + $0x68] sm:$0xff]
    %v230 = vld [vmem:[#allocation8 + $0x70] sm:$0xff]
    %v231 = vld [vmem:[#allocation8 + $0x78] sm:$0xff]
    %v232 = vld [vmem:[#allocation8 + $0x80] sm:$0xff]
    %v233 = vld [vmem:[#allocation8 + $0x88] sm:$0xff]
    %v234 = vld [vmem:[#allocation8 + $0x90] sm:$0xff]
    %v235 = vld [vmem:[#allocation8 + $0x98] sm:$0xff]
    %v236 = vld [vmem:[#allocation8 + $0xa0] sm:$0xff]
    %v237 = vld [vmem:[#allocation8 + $0xa8] sm:$0xff]
    %v238 = vld [vmem:[#allocation8 + $0xb0] sm:$0xff]
    %v239 = vld [vmem:[#allocation8 + $0xb8] sm:$0xff]
    %v240 = vld [vmem:[#allocation8 + $0xc0] sm:$0xff]
    %v241 = vld [vmem:[#allocation8 + $0xc8] sm:$0xff]
    %v242 = vld [vmem:[#allocation8 + $0xd0] sm:$0xff]
    %v243 = vld [vmem:[#allocation8 + $0xd8] sm:$0xff]
    %v244 = vld [vmem:[#allocation8 + $0xe0] sm:$0xff]
    %v245 = vld [vmem:[#allocation8 + $0xe8] sm:$0xff]
    %v246 = vld [vmem:[#allocation8 + $0xf0] sm:$0xff]
    %v247 = vld [vmem:[#allocation8 + $0xf8] sm:$0xff]
    %v248 = vld [vmem:[#allocation8 + $0x100] sm:$0xff]
    %v249 = vld [vmem:[#allocation8 + $0x108] sm:$0xff]
    %v250 = vld [vmem:[#allocation8 + $0x110] sm:$0xff]
    %v251 = vld [vmem:[#allocation8 + $0x118] sm:$0xff]
    %v252 = vld [vmem:[#allocation8 + $0x120] sm:$0xff]
    %v253 = vld [vmem:[#allocation8 + $0x128] sm:$0xff]
    %v254 = vld [vmem:[#allocation8 + $0x130] sm:$0xff]
    %v255 = vld [vmem:[#allocation8 + $0x138] sm:$0xff]
    %v256 = vld [vmem:[#allocation8 + $0x140] sm:$0xff]
    %v257 = vld [vmem:[#allocation8 + $0x148] sm:$0xff]
    %v258 = vld [vmem:[#allocation8 + $0x150] sm:$0xff]
    %v259 = vld [vmem:[#allocation8 + $0x158] sm:$0xff]
    %v260 = vld [vmem:[#allocation8 + $0x160] sm:$0xff]
    %v261 = vld [vmem:[#allocation8 + $0x168] sm:$0xff]
    %v262 = vld [vmem:[#allocation8 + $0x170] sm:$0xff]
    %v263 = vld [vmem:[#allocation8 + $0x178] sm:$0xff]
    %v264 = vld [vmem:[#allocation8 + $0x180] sm:$0xff]
    %v265 = vld [vmem:[#allocation8 + $0x188] sm:$0xff]
    %v266 = vld [vmem:[#allocation8 + $0x190] sm:$0xff]
    %v267 = vld [vmem:[#allocation8 + $0x198] sm:$0xff]
    %v268 = vld [vmem:[#allocation8 + $0x1a0] sm:$0xff]
    %v269 = vld [vmem:[#allocation8 + $0x1a8] sm:$0xff]
    %v270 = vld [vmem:[#allocation8 + $0x1b0] sm:$0xff]
    %v271 = vld [vmem:[#allocation8 + $0x1b8] sm:$0xff]
    %v272 = vld [vmem:[#allocation10] sm:$0x3]
    %v274 = vlaneseq
    %v275 = vshrl.u32 %v274, 7
    %v276 = vsub.s32 0, %v275
    %v277 = vrot.slane %v272, %v276
    %v278 = vlaneseq
    %v279 = vshrl.u32 %v278, 7
    %v280 = vsub.s32 1, %v279
    %v281 = vrot.slane %v272, %v280
    %vm284 = vcmask 785408
    %v286 = vsel %vm284, %v215, 0
    %288 = vmatprep.subr.mxu0 %v217
    %289 = vmatpush1.msra.mxu0 %v216
    %290 = vmatprep.subr.mxu0 %v219
    %291 = vmatpush1.msra.mxu0 %v218
    %292 = vmatprep.subr.mxu0 %v221
    %293 = vmatpush1.msra.mxu0 %v220
    %294 = vmatprep.subr.mxu0 %v223
    %295 = vmatpush1.msra.mxu0 %v222
    %296 = vmatprep.subr.mxu0 %v225
    %297 = vmatpush1.msra.mxu0 %v224
    %298 = vmatprep.subr.mxu0 %v227
    %299 = vmatpush1.msra.mxu0 %v226
    %300 = vmatprep.subr.mxu0 %v229
    %301 = vmatpush1.msra.mxu0 %v228
    %302 = vmatprep.subr.mxu0 %v231
    %303 = vmatpush1.msra.mxu0 %v230
    %304 = vmatprep.subr.mxu0 %v233
    %305 = vmatpush1.msra.mxu0 %v232
    %306 = vmatprep.subr.mxu0 %v235
    %307 = vmatpush1.msra.mxu0 %v234
    %308 = vmatprep.subr.mxu0 %v237
    %309 = vmatpush1.msra.mxu0 %v236
    %310 = vmatprep.subr.mxu0 %v239
    %311 = vmatpush1.msra.mxu0 %v238
    %312 = vmatprep.subr.mxu0 %v241
    %313 = vmatpush1.msra.mxu0 %v240
    %314 = vmatprep.subr.mxu0 %v243
    %315 = vmatpush1.msra.mxu0 %v242
    %316 = vmatprep.subr.mxu0 %v245
    %317 = vmatpush1.msra.mxu0 %v244
    %318 = vmatprep.subr.mxu0 %v247
    %319 = vmatpush1.msra.mxu0 %v246
    %320 = vmatprep.subr.mxu0 %v249
    %321 = vmatpush1.msra.mxu0 %v248
    %322 = vmatprep.subr.mxu0 %v251
    %323 = vmatpush1.msra.mxu0 %v250
    %324 = vmatprep.subr.mxu0 %v253
    %325 = vmatpush1.msra.mxu0 %v252
    %326 = vmatprep.subr.mxu0 %v255
    %327 = vmatpush1.msra.mxu0 %v254
    %328 = vmatprep.subr.mxu0 %v257
    %329 = vmatpush1.msra.mxu0 %v256
    %330 = vmatprep.subr.mxu0 %v259
    %331 = vmatpush1.msra.mxu0 %v258
    %332 = vmatprep.subr.mxu0 %v261
    %333 = vmatpush1.msra.mxu0 %v260
    %334 = vmatprep.subr.mxu0 %v263
    %335 = vmatpush1.msra.mxu0 %v262
    %336 = vmatprep.subr.mxu0 %v265
    %337 = vmatpush1.msra.mxu0 %v264
    %338 = vmatprep.subr.mxu0 %v267
    %339 = vmatpush1.msra.mxu0 %v266
    %340 = vmatprep.subr.mxu0 %v269
    %341 = vmatpush1.msra.mxu0 %v268
    %342 = vmatprep.subr.mxu0 %v271
    %343 = vmatpush1.msra.mxu0 %v270
    %344 = vmatprep.subr.mxu0 0.0
    %345 = vmatpush1.msra.mxu0 0.0
    %346 = vmatprep.subr.mxu0 0.0
    %347 = vmatpush1.msra.mxu0 0.0
    %348 = vmatprep.subr.mxu0 0.0
    %349 = vmatpush1.msra.mxu0 0.0
    %350 = vmatprep.subr.mxu0 0.0
    %351 = vmatpush1.msra.mxu0 0.0
    %352 = vmatprep.mubr.f32.mxu0 %v286
    %353 = vmatmul.mubr.f32.gmra.mrb[0].mxu0 %v214
    %v354 = vpop.f32.mrb[0].mxu0
    %v355 = vadd.f32 %v277, %v354
    %v356 = vpop.f32.mrb[0].mxu0
    %v357 = vadd.f32 %v281, %v356
    %358 = vdwg.mxu0
    %v359 = vxor.u32 %v355, 2147483648
    %v360 = vxor.u32 %v357, 2147483648
    %v361 = vmul.f32 %v359, 1.442695
    %v362 = vpow.pop %v361
    %v363 = vmul.f32 %v360, 1.442695
    %v364 = vpow.pop %v363
    %v365 = vadd.f32 %v362, 1.0
    %v366 = vadd.f32 %v364, 1.0
    %v367 = vrcp.pop %v365
    %v368 = vmul.f32 1.0, %v367
    %v369 = vrcp.pop %v366
    %v370 = vmul.f32 1.0, %v369
    %v371 = vmul.f32 %v355, %v368
    %v372 = vmul.f32 %v357, %v370
    %v373 = vld [vmem:[#allocation11] sm:$0xff]
    %v374 = vld [vmem:[#allocation11 + $0x8] sm:$0xff]
    %v375 = vld [vmem:[#allocation11 + $0x10] sm:$0xff]
    %v376 = vld [vmem:[#allocation11 + $0x18] sm:$0xff]
    %v377 = vld [vmem:[#allocation11 + $0x20] sm:$0xff]
    %v378 = vld [vmem:[#allocation11 + $0x28] sm:$0xff]
    %v379 = vld [vmem:[#allocation11 + $0x30] sm:$0xff]
    %v380 = vld [vmem:[#allocation11 + $0x38] sm:$0xff]
    %v381 = vld [vmem:[#allocation11 + $0x40] sm:$0xff]
    %v382 = vld [vmem:[#allocation11 + $0x48] sm:$0xff]
    %v383 = vld [vmem:[#allocation11 + $0x50] sm:$0xff]
    %v384 = vld [vmem:[#allocation11 + $0x58] sm:$0xff]
    %v385 = vld [vmem:[%s6] sm:$0x7]
    %v387 = vlaneseq
    %v388 = vshrl.u32 %v387, 7
    %v389 = vsub.s32 0, %v388
    %v390 = vrot.slane %v385, %v389
    %v391 = vlaneseq
    %v392 = vshrl.u32 %v391, 7
    %v393 = vsub.s32 1, %v392
    %v394 = vrot.slane %v385, %v393
    %v395 = vlaneseq
    %v396 = vshrl.u32 %v395, 7
    %v397 = vsub.s32 2, %v396
    %v398 = vrot.slane %v385, %v397
    %vm402 = vcmask 261120
    %v404 = vsel %vm402, %v371, 0
    %406 = vmatprep.subr.mxu0 %v374
    %407 = vmatpush1.msra.mxu0 %v373
    %408 = vmatprep.subr.mxu0 %v377
    %409 = vmatpush1.msra.mxu0 %v376
    %410 = vmatprep.subr.mxu0 %v380
    %411 = vmatpush1.msra.mxu0 %v379
    %412 = vmatprep.subr.mxu0 %v383
    %413 = vmatpush1.msra.mxu0 %v382
    %414 = vmatprep.subr.mxu0 0.0
    %415 = vmatpush1.msra.mxu0 0.0
    %416 = vmatprep.subr.mxu0 0.0
    %417 = vmatpush1.msra.mxu0 0.0
    %418 = vmatprep.subr.mxu0 0.0
    %419 = vmatpush1.msra.mxu0 0.0
    %420 = vmatprep.subr.mxu0 0.0
    %421 = vmatpush1.msra.mxu0 0.0
    %422 = vmatprep.subr.mxu0 0.0
    %423 = vmatpush1.msra.mxu0 0.0
    %424 = vmatprep.subr.mxu0 0.0
    %425 = vmatpush1.msra.mxu0 0.0
    %426 = vmatprep.subr.mxu0 0.0
    %427 = vmatpush1.msra.mxu0 0.0
    %428 = vmatprep.subr.mxu0 0.0
    %429 = vmatpush1.msra.mxu0 0.0
    %430 = vmatprep.subr.mxu0 0.0
    %431 = vmatpush1.msra.mxu0 0.0
    %432 = vmatprep.subr.mxu0 0.0
    %433 = vmatpush1.msra.mxu0 0.0
    %434 = vmatprep.subr.mxu0 0.0
    %435 = vmatpush1.msra.mxu0 0.0
    %436 = vmatprep.subr.mxu0 0.0
    %437 = vmatpush1.msra.mxu0 0.0
    %438 = vmatprep.subr.mxu0 0.0
    %439 = vmatpush1.msra.mxu0 0.0
    %440 = vmatprep.subr.mxu0 0.0
    %441 = vmatpush1.msra.mxu0 0.0
    %442 = vmatprep.subr.mxu0 0.0
    %443 = vmatpush1.msra.mxu0 0.0
    %444 = vmatprep.subr.mxu0 0.0
    %445 = vmatpush1.msra.mxu0 0.0
    %446 = vmatprep.subr.mxu0 0.0
    %447 = vmatpush1.msra.mxu0 0.0
    %448 = vmatprep.subr.mxu0 0.0
    %449 = vmatpush1.msra.mxu0 0.0
    %450 = vmatprep.subr.mxu0 0.0
    %451 = vmatpush1.msra.mxu0 0.0
    %452 = vmatprep.subr.mxu0 0.0
    %453 = vmatpush1.msra.mxu0 0.0
    %454 = vmatprep.subr.mxu0 0.0
    %455 = vmatpush1.msra.mxu0 0.0
    %456 = vmatprep.subr.mxu0 0.0
    %457 = vmatpush1.msra.mxu0 0.0
    %458 = vmatprep.subr.mxu0 0.0
    %459 = vmatpush1.msra.mxu0 0.0
    %460 = vmatprep.subr.mxu0 0.0
    %461 = vmatpush1.msra.mxu0 0.0
    %462 = vmatprep.subr.mxu0 0.0
    %463 = vmatpush1.msra.mxu0 0.0
    %464 = vmatprep.subr.mxu0 0.0
    %465 = vmatpush1.msra.mxu0 0.0
    %466 = vmatprep.subr.mxu0 0.0
    %467 = vmatpush1.msra.mxu0 0.0
    %468 = vmatprep.subr.mxu0 0.0
    %469 = vmatpush1.msra.mxu0 0.0
    %470 = vmatprep.mubr.f32.mxu0 0.0
    %471 = vmatmul.mubr.f32.gmra.mrb[0].mxu0 %v404
    %v472 = vpop.f32.mrb[0].mxu0
    %v473 = vadd.f32 %v390, %v472
    %v474 = vpop.f32.mrb[0].mxu0
    %v475 = vadd.f32 %v394, %v474
    %476 = vdwg.mxu0
    %477 = vmatprep.subr.mxu0 0.0
    %478 = vmatpush1.msra.mxu0 %v375
    %479 = vmatprep.subr.mxu0 0.0
    %480 = vmatpush1.msra.mxu0 %v378
    %481 = vmatprep.subr.mxu0 0.0
    %482 = vmatpush1.msra.mxu0 %v381
    %483 = vmatprep.subr.mxu0 0.0
    %484 = vmatpush1.msra.mxu0 %v384
    %485 = vmatprep.subr.mxu0 0.0
    %486 = vmatpush1.msra.mxu0 0.0
    %487 = vmatprep.subr.mxu0 0.0
    %488 = vmatpush1.msra.mxu0 0.0
    %489 = vmatprep.subr.mxu0 0.0
    %490 = vmatpush1.msra.mxu0 0.0
    %491 = vmatprep.subr.mxu0 0.0
    %492 = vmatpush1.msra.mxu0 0.0
    %493 = vmatprep.subr.mxu0 0.0
    %494 = vmatpush1.msra.mxu0 0.0
    %495 = vmatprep.subr.mxu0 0.0
    %496 = vmatpush1.msra.mxu0 0.0
    %497 = vmatprep.subr.mxu0 0.0
    %498 = vmatpush1.msra.mxu0 0.0
    %499 = vmatprep.subr.mxu0 0.0
    %500 = vmatpush1.msra.mxu0 0.0
    %501 = vmatprep.subr.mxu0 0.0
    %502 = vmatpush1.msra.mxu0 0.0
    %503 = vmatprep.subr.mxu0 0.0
    %504 = vmatpush1.msra.mxu0 0.0
    %505 = vmatprep.subr.mxu0 0.0
    %506 = vmatpush1.msra.mxu0 0.0
    %507 = vmatprep.subr.mxu0 0.0
    %508 = vmatpush1.msra.mxu0 0.0
    %509 = vmatprep.subr.mxu0 0.0
    %510 = vmatpush1.msra.mxu0 0.0
    %511 = vmatprep.subr.mxu0 0.0
    %512 = vmatpush1.msra.mxu0 0.0
    %513 = vmatprep.subr.mxu0 0.0
    %514 = vmatpush1.msra.mxu0 0.0
    %515 = vmatprep.subr.mxu0 0.0
    %516 = vmatpush1.msra.mxu0 0.0
    %517 = vmatprep.subr.mxu0 0.0
    %518 = vmatpush1.msra.mxu0 0.0
    %519 = vmatprep.subr.mxu0 0.0
    %520 = vmatpush1.msra.mxu0 0.0
    %521 = vmatprep.subr.mxu0 0.0
    %522 = vmatpush1.msra.mxu0 0.0
    %523 = vmatprep.subr.mxu0 0.0
    %524 = vmatpush1.msra.mxu0 0.0
    %525 = vmatprep.subr.mxu0 0.0
    %526 = vmatpush1.msra.mxu0 0.0
    %527 = vmatprep.subr.mxu0 0.0
    %528 = vmatpush1.msra.mxu0 0.0
    %529 = vmatprep.subr.mxu0 0.0
    %530 = vmatpush1.msra.mxu0 0.0
    %531 = vmatprep.subr.mxu0 0.0
    %532 = vmatpush1.msra.mxu0 0.0
    %533 = vmatprep.subr.mxu0 0.0
    %534 = vmatpush1.msra.mxu0 0.0
    %535 = vmatprep.subr.mxu0 0.0
    %536 = vmatpush1.msra.mxu0 0.0
    %537 = vmatprep.subr.mxu0 0.0
    %538 = vmatpush1.msra.mxu0 0.0
    %539 = vmatprep.subr.mxu0 0.0
    %540 = vmatpush1.msra.mxu0 0.0
    %541 = vmatprep.mubr.f32.mxu0 0.0
    %542 = vmatmul.mubr.f32.gmra.mrb[0].mxu0 %v404
    %v543 = vpop.f32.mrb[0].mxu0
    %v544 = vadd.f32 %v398, %v543
    %v545 = vpop.f32.mrb[0].mxu0
    %546 = vdwg.mxu0
    %547 = vst [vmem:[#allocation13] sm:$0xff] %v473
    %548 = vst [vmem:[#allocation13 + $0x8] sm:$0xff] %v475
    %vm549 = vcmask 850944
    %550 = vst.msk [vmem:[#allocation13 + $0x10] sm:$0xff] %vm549, %v544
    %s551 = scalar_lea.vmem [#allocation11], 96
    %v552 = vld [vmem:[%s551] sm:$0xff]
    %v553 = vld [vmem:[%s551 + $0x8] sm:$0xff]
    %v554 = vld [vmem:[%s551 + $0x10] sm:$0xff]
    %v555 = vld [vmem:[%s551 + $0x18] sm:$0xff]
    %v556 = vld [vmem:[%s551 + $0x20] sm:$0xff]
    %v557 = vld [vmem:[%s551 + $0x28] sm:$0xff]
    %v558 = vld [vmem:[%s551 + $0x30] sm:$0xff]
    %v559 = vld [vmem:[%s551 + $0x38] sm:$0xff]
    %v560 = vld [vmem:[%s551 + $0x40] sm:$0xff]
    %v561 = vld [vmem:[%s551 + $0x48] sm:$0xff]
    %v562 = vld [vmem:[%s551 + $0x50] sm:$0xff]
    %v563 = vld [vmem:[%s551 + $0x58] sm:$0xff]
    %s564 = scalar_lea.vmem %s6, 3
    %v565 = vld [vmem:[%s564] sm:$0x7]
    %v567 = vlaneseq
    %v568 = vshrl.u32 %v567, 7
    %v569 = vsub.s32 0, %v568
    %v570 = vrot.slane %v565, %v569
    %v571 = vlaneseq
    %v572 = vshrl.u32 %v571, 7
    %v573 = vsub.s32 1, %v572
    %v574 = vrot.slane %v565, %v573
    %v575 = vlaneseq
    %v576 = vshrl.u32 %v575, 7
    %v577 = vsub.s32 2, %v576
    %v578 = vrot.slane %v565, %v577
    %582 = vrot.lane.b32.xlu0 %v371, 96
    %v583 = vpop.permute.xlu0 %582
    %v584 = vsel %vm402, %v583, 0
    %586 = vmatprep.subr.mxu0 %v553
    %587 = vmatpush1.msra.mxu0 %v552
    %588 = vmatprep.subr.mxu0 %v556
    %589 = vmatpush1.msra.mxu0 %v555
    %590 = vmatprep.subr.mxu0 %v559
    %591 = vmatpush1.msra.mxu0 %v558
    %592 = vmatprep.subr.mxu0 %v562
    %593 = vmatpush1.msra.mxu0 %v561
    %594 = vmatprep.subr.mxu0 0.0
    %595 = vmatpush1.msra.mxu0 0.0
    %596 = vmatprep.subr.mxu0 0.0
    %597 = vmatpush1.msra.mxu0 0.0
    %598 = vmatprep.subr.mxu0 0.0
    %599 = vmatpush1.msra.mxu0 0.0
    %600 = vmatprep.subr.mxu0 0.0
    %601 = vmatpush1.msra.mxu0 0.0
    %602 = vmatprep.subr.mxu0 0.0
    %603 = vmatpush1.msra.mxu0 0.0
    %604 = vmatprep.subr.mxu0 0.0
    %605 = vmatpush1.msra.mxu0 0.0
    %606 = vmatprep.subr.mxu0 0.0
    %607 = vmatpush1.msra.mxu0 0.0
    %608 = vmatprep.subr.mxu0 0.0
    %609 = vmatpush1.msra.mxu0 0.0
    %610 = vmatprep.subr.mxu0 0.0
    %611 = vmatpush1.msra.mxu0 0.0
    %612 = vmatprep.subr.mxu0 0.0
    %613 = vmatpush1.msra.mxu0 0.0
    %614 = vmatprep.subr.mxu0 0.0
    %615 = vmatpush1.msra.mxu0 0.0
    %616 = vmatprep.subr.mxu0 0.0
    %617 = vmatpush1.msra.mxu0 0.0
    %618 = vmatprep.subr.mxu0 0.0
    %619 = vmatpush1.msra.mxu0 0.0
    %620 = vmatprep.subr.mxu0 0.0
    %621 = vmatpush1.msra.mxu0 0.0
    %622 = vmatprep.subr.mxu0 0.0
    %623 = vmatpush1.msra.mxu0 0.0
    %624 = vmatprep.subr.mxu0 0.0
    %625 = vmatpush1.msra.mxu0 0.0
    %626 = vmatprep.subr.mxu0 0.0
    %627 = vmatpush1.msra.mxu0 0.0
    %628 = vmatprep.subr.mxu0 0.0
    %629 = vmatpush1.msra.mxu0 0.0
    %630 = vmatprep.subr.mxu0 0.0
    %631 = vmatpush1.msra.mxu0 0.0
    %632 = vmatprep.subr.mxu0 0.0
    %633 = vmatpush1.msra.mxu0 0.0
    %634 = vmatprep.subr.mxu0 0.0
    %635 = vmatpush1.msra.mxu0 0.0
    %636 = vmatprep.subr.mxu0 0.0
    %637 = vmatpush1.msra.mxu0 0.0
    %638 = vmatprep.subr.mxu0 0.0
    %639 = vmatpush1.msra.mxu0 0.0
    %640 = vmatprep.subr.mxu0 0.0
    %641 = vmatpush1.msra.mxu0 0.0
    %642 = vmatprep.subr.mxu0 0.0
    %643 = vmatpush1.msra.mxu0 0.0
    %644 = vmatprep.subr.mxu0 0.0
    %645 = vmatpush1.msra.mxu0 0.0
    %646 = vmatprep.subr.mxu0 0.0
    %647 = vmatpush1.msra.mxu0 0.0
    %648 = vmatprep.subr.mxu0 0.0
    %649 = vmatpush1.msra.mxu0 0.0
    %650 = vmatprep.mubr.f32.mxu0 0.0
    %651 = vmatmul.mubr.f32.gmra.mrb[0].mxu0 %v584
    %v652 = vpop.f32.mrb[0].mxu0
    %v653 = vadd.f32 %v570, %v652
    %v654 = vpop.f32.mrb[0].mxu0
    %v655 = vadd.f32 %v574, %v654
    %656 = vdwg.mxu0
    %657 = vmatprep.subr.mxu0 0.0
    %658 = vmatpush1.msra.mxu0 %v554
    %659 = vmatprep.subr.mxu0 0.0
    %660 = vmatpush1.msra.mxu0 %v557
    %661 = vmatprep.subr.mxu0 0.0
    %662 = vmatpush1.msra.mxu0 %v560
    %663 = vmatprep.subr.mxu0 0.0
    %664 = vmatpush1.msra.mxu0 %v563
    %665 = vmatprep.subr.mxu0 0.0
    %666 = vmatpush1.msra.mxu0 0.0
    %667 = vmatprep.subr.mxu0 0.0
    %668 = vmatpush1.msra.mxu0 0.0
    %669 = vmatprep.subr.mxu0 0.0
    %670 = vmatpush1.msra.mxu0 0.0
    %671 = vmatprep.subr.mxu0 0.0
    %672 = vmatpush1.msra.mxu0 0.0
    %673 = vmatprep.subr.mxu0 0.0
    %674 = vmatpush1.msra.mxu0 0.0
    %675 = vmatprep.subr.mxu0 0.0
    %676 = vmatpush1.msra.mxu0 0.0
    %677 = vmatprep.subr.mxu0 0.0
    %678 = vmatpush1.msra.mxu0 0.0
    %679 = vmatprep.subr.mxu0 0.0
    %680 = vmatpush1.msra.mxu0 0.0
    %681 = vmatprep.subr.mxu0 0.0
    %682 = vmatpush1.msra.mxu0 0.0
    %683 = vmatprep.subr.mxu0 0.0
    %684 = vmatpush1.msra.mxu0 0.0
    %685 = vmatprep.subr.mxu0 0.0
    %686 = vmatpush1.msra.mxu0 0.0
    %687 = vmatprep.subr.mxu0 0.0
    %688 = vmatpush1.msra.mxu0 0.0
    %689 = vmatprep.subr.mxu0 0.0
    %690 = vmatpush1.msra.mxu0 0.0
    %691 = vmatprep.subr.mxu0 0.0
    %692 = vmatpush1.msra.mxu0 0.0
    %693 = vmatprep.subr.mxu0 0.0
    %694 = vmatpush1.msra.mxu0 0.0
    %695 = vmatprep.subr.mxu0 0.0
    %696 = vmatpush1.msra.mxu0 0.0
    %697 = vmatprep.subr.mxu0 0.0
    %698 = vmatpush1.msra.mxu0 0.0
    %699 = vmatprep.subr.mxu0 0.0
    %700 = vmatpush1.msra.mxu0 0.0
    %701 = vmatprep.subr.mxu0 0.0
    %702 = vmatpush1.msra.mxu0 0.0
    %703 = vmatprep.subr.mxu0 0.0
    %704 = vmatpush1.msra.mxu0 0.0
    %705 = vmatprep.subr.mxu0 0.0
    %706 = vmatpush1.msra.mxu0 0.0
    %707 = vmatprep.subr.mxu0 0.0
    %708 = vmatpush1.msra.mxu0 0.0
    %709 = vmatprep.subr.mxu0 0.0
    %710 = vmatpush1.msra.mxu0 0.0
    %711 = vmatprep.subr.mxu0 0.0
    %712 = vmatpush1.msra.mxu0 0.0
    %713 = vmatprep.subr.mxu0 0.0
    %714 = vmatpush1.msra.mxu0 0.0
    %715 = vmatprep.subr.mxu0 0.0
    %716 = vmatpush1.msra.mxu0 0.0
    %717 = vmatprep.subr.mxu0 0.0
    %718 = vmatpush1.msra.mxu0 0.0
    %719 = vmatprep.subr.mxu0 0.0
    %720 = vmatpush1.msra.mxu0 0.0
    %721 = vmatprep.mubr.f32.mxu0 0.0
    %722 = vmatmul.mubr.f32.gmra.mrb[0].mxu0 %v584
    %v723 = vpop.f32.mrb[0].mxu0
    %v724 = vadd.f32 %v578, %v723
    %v725 = vpop.f32.mrb[0].mxu0
    %726 = vdwg.mxu0
    %s727 = scalar_lea.vmem [#allocation13], 24
    %728 = vst [vmem:[%s727] sm:$0xff] %v653
    %729 = vst [vmem:[%s727 + $0x8] sm:$0xff] %v655
    %730 = vst.msk [vmem:[%s727 + $0x10] sm:$0xff] %vm549, %v724
    %s731 = scalar_lea.vmem [#allocation11], 192
    %v732 = vld [vmem:[%s731] sm:$0xff]
    %v733 = vld [vmem:[%s731 + $0x8] sm:$0xff]
    %v734 = vld [vmem:[%s731 + $0x10] sm:$0xff]
    %v735 = vld [vmem:[%s731 + $0x18] sm:$0xff]
    %v736 = vld [vmem:[%s731 + $0x20] sm:$0xff]
    %v737 = vld [vmem:[%s731 + $0x28] sm:$0xff]
    %v738 = vld [vmem:[%s731 + $0x30] sm:$0xff]
    %v739 = vld [vmem:[%s731 + $0x38] sm:$0xff]
    %v740 = vld [vmem:[%s731 + $0x40] sm:$0xff]
    %v741 = vld [vmem:[%s731 + $0x48] sm:$0xff]
    %v742 = vld [vmem:[%s731 + $0x50] sm:$0xff]
    %v743 = vld [vmem:[%s731 + $0x58] sm:$0xff]
    %s744 = scalar_lea.vmem %s6, 6
    %v745 = vld [vmem:[%s744] sm:$0x7]
    %v747 = vlaneseq
    %v748 = vshrl.u32 %v747, 7
    %v749 = vsub.s32 0, %v748
    %v750 = vrot.slane %v745, %v749
    %v751 = vlaneseq
    %v752 = vshrl.u32 %v751, 7
    %v753 = vsub.s32 1, %v752
    %v754 = vrot.slane %v745, %v753
    %v755 = vlaneseq
    %v756 = vshrl.u32 %v755, 7
    %v757 = vsub.s32 2, %v756
    %v758 = vrot.slane %v745, %v757
    %762 = vrot.lane.b32.xlu0 %v371, 64
    %v763 = vpop.permute.xlu0 %762
    %v764 = vsel %vm402, %v763, 0
    %766 = vmatprep.subr.mxu0 %v733
    %767 = vmatpush1.msra.mxu0 %v732
    %768 = vmatprep.subr.mxu0 %v736
    %769 = vmatpush1.msra.mxu0 %v735
    %770 = vmatprep.subr.mxu0 %v739
    %771 = vmatpush1.msra.mxu0 %v738
    %772 = vmatprep.subr.mxu0 %v742
    %773 = vmatpush1.msra.mxu0 %v741
    %774 = vmatprep.subr.mxu0 0.0
    %775 = vmatpush1.msra.mxu0 0.0
    %776 = vmatprep.subr.mxu0 0.0
    %777 = vmatpush1.msra.mxu0 0.0
    %778 = vmatprep.subr.mxu0 0.0
    %779 = vmatpush1.msra.mxu0 0.0
    %780 = vmatprep.subr.mxu0 0.0
    %781 = vmatpush1.msra.mxu0 0.0
    %782 = vmatprep.subr.mxu0 0.0
    %783 = vmatpush1.msra.mxu0 0.0
    %784 = vmatprep.subr.mxu0 0.0
    %785 = vmatpush1.msra.mxu0 0.0
    %786 = vmatprep.subr.mxu0 0.0
    %787 = vmatpush1.msra.mxu0 0.0
    %788 = vmatprep.subr.mxu0 0.0
    %789 = vmatpush1.msra.mxu0 0.0
    %790 = vmatprep.subr.mxu0 0.0
    %791 = vmatpush1.msra.mxu0 0.0
    %792 = vmatprep.subr.mxu0 0.0
    %793 = vmatpush1.msra.mxu0 0.0
    %794 = vmatprep.subr.mxu0 0.0
    %795 = vmatpush1.msra.mxu0 0.0
    %796 = vmatprep.subr.mxu0 0.0
    %797 = vmatpush1.msra.mxu0 0.0
    %798 = vmatprep.subr.mxu0 0.0
    %799 = vmatpush1.msra.mxu0 0.0
    %800 = vmatprep.subr.mxu0 0.0
    %801 = vmatpush1.msra.mxu0 0.0
    %802 = vmatprep.subr.mxu0 0.0
    %803 = vmatpush1.msra.mxu0 0.0
    %804 = vmatprep.subr.mxu0 0.0
    %805 = vmatpush1.msra.mxu0 0.0
    %806 = vmatprep.subr.mxu0 0.0
    %807 = vmatpush1.msra.mxu0 0.0
    %808 = vmatprep.subr.mxu0 0.0
    %809 = vmatpush1.msra.mxu0 0.0
    %810 = vmatprep.subr.mxu0 0.0
    %811 = vmatpush1.msra.mxu0 0.0
    %812 = vmatprep.subr.mxu0 0.0
    %813 = vmatpush1.msra.mxu0 0.0
    %814 = vmatprep.subr.mxu0 0.0
    %815 = vmatpush1.msra.mxu0 0.0
    %816 = vmatprep.subr.mxu0 0.0
    %817 = vmatpush1.msra.mxu0 0.0
    %818 = vmatprep.subr.mxu0 0.0
    %819 = vmatpush1.msra.mxu0 0.0
    %820 = vmatprep.subr.mxu0 0.0
    %821 = vmatpush1.msra.mxu0 0.0
    %822 = vmatprep.subr.mxu0 0.0
    %823 = vmatpush1.msra.mxu0 0.0
    %824 = vmatprep.subr.mxu0 0.0
    %825 = vmatpush1.msra.mxu0 0.0
    %826 = vmatprep.subr.mxu0 0.0
    %827 = vmatpush1.msra.mxu0 0.0
    %828 = vmatprep.subr.mxu0 0.0
    %829 = vmatpush1.msra.mxu0 0.0
    %830 = vmatprep.mubr.f32.mxu0 0.0
    %831 = vmatmul.mubr.f32.gmra.mrb[0].mxu0 %v764
    %v832 = vpop.f32.mrb[0].mxu0
    %v833 = vadd.f32 %v750, %v832
    %v834 = vpop.f32.mrb[0].mxu0
    %v835 = vadd.f32 %v754, %v834
    %836 = vdwg.mxu0
    %837 = vmatprep.subr.mxu0 0.0
    %838 = vmatpush1.msra.mxu0 %v734
    %839 = vmatprep.subr.mxu0 0.0
    %840 = vmatpush1.msra.mxu0 %v737
    %841 = vmatprep.subr.mxu0 0.0
    %842 = vmatpush1.msra.mxu0 %v740
    %843 = vmatprep.subr.mxu0 0.0
    %844 = vmatpush1.msra.mxu0 %v743
    %845 = vmatprep.subr.mxu0 0.0
    %846 = vmatpush1.msra.mxu0 0.0
    %847 = vmatprep.subr.mxu0 0.0
    %848 = vmatpush1.msra.mxu0 0.0
    %849 = vmatprep.subr.mxu0 0.0
    %850 = vmatpush1.msra.mxu0 0.0
    %851 = vmatprep.subr.mxu0 0.0
    %852 = vmatpush1.msra.mxu0 0.0
    %853 = vmatprep.subr.mxu0 0.0
    %854 = vmatpush1.msra.mxu0 0.0
    %855 = vmatprep.subr.mxu0 0.0
    %856 = vmatpush1.msra.mxu0 0.0
    %857 = vmatprep.subr.mxu0 0.0
    %858 = vmatpush1.msra.mxu0 0.0
    %859 = vmatprep.subr.mxu0 0.0
    %860 = vmatpush1.msra.mxu0 0.0
    %861 = vmatprep.subr.mxu0 0.0
    %862 = vmatpush1.msra.mxu0 0.0
    %863 = vmatprep.subr.mxu0 0.0
    %864 = vmatpush1.msra.mxu0 0.0
    %865 = vmatprep.subr.mxu0 0.0
    %866 = vmatpush1.msra.mxu0 0.0
    %867 = vmatprep.subr.mxu0 0.0
    %868 = vmatpush1.msra.mxu0 0.0
    %869 = vmatprep.subr.mxu0 0.0
    %870 = vmatpush1.msra.mxu0 0.0
    %871 = vmatprep.subr.mxu0 0.0
    %872 = vmatpush1.msra.mxu0 0.0
    %873 = vmatprep.subr.mxu0 0.0
    %874 = vmatpush1.msra.mxu0 0.0
    %875 = vmatprep.subr.mxu0 0.0
    %876 = vmatpush1.msra.mxu0 0.0
    %877 = vmatprep.subr.mxu0 0.0
    %878 = vmatpush1.msra.mxu0 0.0
    %879 = vmatprep.subr.mxu0 0.0
    %880 = vmatpush1.msra.mxu0 0.0
    %881 = vmatprep.subr.mxu0 0.0
    %882 = vmatpush1.msra.mxu0 0.0
    %883 = vmatprep.subr.mxu0 0.0
    %884 = vmatpush1.msra.mxu0 0.0
    %885 = vmatprep.subr.mxu0 0.0
    %886 = vmatpush1.msra.mxu0 0.0
    %887 = vmatprep.subr.mxu0 0.0
    %888 = vmatpush1.msra.mxu0 0.0
    %889 = vmatprep.subr.mxu0 0.0
    %890 = vmatpush1.msra.mxu0 0.0
    %891 = vmatprep.subr.mxu0 0.0
    %892 = vmatpush1.msra.mxu0 0.0
    %893 = vmatprep.subr.mxu0 0.0
    %894 = vmatpush1.msra.mxu0 0.0
    %895 = vmatprep.subr.mxu0 0.0
    %896 = vmatpush1.msra.mxu0 0.0
    %897 = vmatprep.subr.mxu0 0.0
    %898 = vmatpush1.msra.mxu0 0.0
    %899 = vmatprep.subr.mxu0 0.0
    %900 = vmatpush1.msra.mxu0 0.0
    %901 = vmatprep.mubr.f32.mxu0 0.0
    %902 = vmatmul.mubr.f32.gmra.mrb[0].mxu0 %v764
    %v903 = vpop.f32.mrb[0].mxu0
    %v904 = vadd.f32 %v758, %v903
    %v905 = vpop.f32.mrb[0].mxu0
    %906 = vdwg.mxu0
    %s907 = scalar_lea.vmem [#allocation13], 48
    %908 = vst [vmem:[%s907] sm:$0xff] %v833
    %909 = vst [vmem:[%s907 + $0x8] sm:$0xff] %v835
    %910 = vst.msk [vmem:[%s907 + $0x10] sm:$0xff] %vm549, %v904
    %s911 = scalar_lea.vmem [#allocation11], 288
    %v912 = vld [vmem:[%s911] sm:$0xff]
    %v913 = vld [vmem:[%s911 + $0x8] sm:$0xff]
    %v914 = vld [vmem:[%s911 + $0x10] sm:$0xff]
    %v915 = vld [vmem:[%s911 + $0x18] sm:$0xff]
    %v916 = vld [vmem:[%s911 + $0x20] sm:$0xff]
    %v917 = vld [vmem:[%s911 + $0x28] sm:$0xff]
    %v918 = vld [vmem:[%s911 + $0x30] sm:$0xff]
    %v919 = vld [vmem:[%s911 + $0x38] sm:$0xff]
    %v920 = vld [vmem:[%s911 + $0x40] sm:$0xff]
    %v921 = vld [vmem:[%s911 + $0x48] sm:$0xff]
    %v922 = vld [vmem:[%s911 + $0x50] sm:$0xff]
    %v923 = vld [vmem:[%s911 + $0x58] sm:$0xff]
    %s924 = scalar_lea.vmem %s6, 9
    %v925 = vld [vmem:[%s924] sm:$0x7]
    %v927 = vlaneseq
    %v928 = vshrl.u32 %v927, 7
    %v929 = vsub.s32 0, %v928
    %v930 = vrot.slane %v925, %v929
    %v931 = vlaneseq
    %v932 = vshrl.u32 %v931, 7
    %v933 = vsub.s32 1, %v932
    %v934 = vrot.slane %v925, %v933
    %v935 = vlaneseq
    %v936 = vshrl.u32 %v935, 7
    %v937 = vsub.s32 2, %v936
    %v938 = vrot.slane %v925, %v937
    %942 = vrot.lane.b32.xlu0 %v371, 32
    %v943 = vpop.permute.xlu0 %942
    %v944 = vsel %vm402, %v943, 0
    %946 = vmatprep.subr.mxu0 %v913
    %947 = vmatpush1.msra.mxu0 %v912
    %948 = vmatprep.subr.mxu0 %v916
    %949 = vmatpush1.msra.mxu0 %v915
    %950 = vmatprep.subr.mxu0 %v919
    %951 = vmatpush1.msra.mxu0 %v918
    %952 = vmatprep.subr.mxu0 %v922
    %953 = vmatpush1.msra.mxu0 %v921
    %954 = vmatprep.subr.mxu0 0.0
    %955 = vmatpush1.msra.mxu0 0.0
    %956 = vmatprep.subr.mxu0 0.0
    %957 = vmatpush1.msra.mxu0 0.0
    %958 = vmatprep.subr.mxu0 0.0
    %959 = vmatpush1.msra.mxu0 0.0
    %960 = vmatprep.subr.mxu0 0.0
    %961 = vmatpush1.msra.mxu0 0.0
    %962 = vmatprep.subr.mxu0 0.0
    %963 = vmatpush1.msra.mxu0 0.0
    %964 = vmatprep.subr.mxu0 0.0
    %965 = vmatpush1.msra.mxu0 0.0
    %966 = vmatprep.subr.mxu0 0.0
    %967 = vmatpush1.msra.mxu0 0.0
    %968 = vmatprep.subr.mxu0 0.0
    %969 = vmatpush1.msra.mxu0 0.0
    %970 = vmatprep.subr.mxu0 0.0
    %971 = vmatpush1.msra.mxu0 0.0
    %972 = vmatprep.subr.mxu0 0.0
    %973 = vmatpush1.msra.mxu0 0.0
    %974 = vmatprep.subr.mxu0 0.0
    %975 = vmatpush1.msra.mxu0 0.0
    %976 = vmatprep.subr.mxu0 0.0
    %977 = vmatpush1.msra.mxu0 0.0
    %978 = vmatprep.subr.mxu0 0.0
    %979 = vmatpush1.msra.mxu0 0.0
    %980 = vmatprep.subr.mxu0 0.0
    %981 = vmatpush1.msra.mxu0 0.0
    %982 = vmatprep.subr.mxu0 0.0
    %983 = vmatpush1.msra.mxu0 0.0
    %984 = vmatprep.subr.mxu0 0.0
    %985 = vmatpush1.msra.mxu0 0.0
    %986 = vmatprep.subr.mxu0 0.0
    %987 = vmatpush1.msra.mxu0 0.0
    %988 = vmatprep.subr.mxu0 0.0
    %989 = vmatpush1.msra.mxu0 0.0
    %990 = vmatprep.subr.mxu0 0.0
    %991 = vmatpush1.msra.mxu0 0.0
    %992 = vmatprep.subr.mxu0 0.0
    %993 = vmatpush1.msra.mxu0 0.0
    %994 = vmatprep.subr.mxu0 0.0
    %995 = vmatpush1.msra.mxu0 0.0
    %996 = vmatprep.subr.mxu0 0.0
    %997 = vmatpush1.msra.mxu0 0.0
    %998 = vmatprep.subr.mxu0 0.0
    %999 = vmatpush1.msra.mxu0 0.0
    %1000 = vmatprep.subr.mxu0 0.0
    %1001 = vmatpush1.msra.mxu0 0.0
    %1002 = vmatprep.subr.mxu0 0.0
    %1003 = vmatpush1.msra.mxu0 0.0
    %1004 = vmatprep.subr.mxu0 0.0
    %1005 = vmatpush1.msra.mxu0 0.0
    %1006 = vmatprep.subr.mxu0 0.0
    %1007 = vmatpush1.msra.mxu0 0.0
    %1008 = vmatprep.subr.mxu0 0.0
    %1009 = vmatpush1.msra.mxu0 0.0
    %1010 = vmatprep.mubr.f32.mxu0 0.0
    %1011 = vmatmul.mubr.f32.gmra.mrb[0].mxu0 %v944
    %v1012 = vpop.f32.mrb[0].mxu0
    %v1013 = vadd.f32 %v930, %v1012
    %v1014 = vpop.f32.mrb[0].mxu0
    %v1015 = vadd.f32 %v934, %v1014
    %1016 = vdwg.mxu0
    %1017 = vmatprep.subr.mxu0 0.0
    %1018 = vmatpush1.msra.mxu0 %v914
    %1019 = vmatprep.subr.mxu0 0.0
    %1020 = vmatpush1.msra.mxu0 %v917
    %1021 = vmatprep.subr.mxu0 0.0
    %1022 = vmatpush1.msra.mxu0 %v920
    %1023 = vmatprep.subr.mxu0 0.0
    %1024 = vmatpush1.msra.mxu0 %v923
    %1025 = vmatprep.subr.mxu0 0.0
    %1026 = vmatpush1.msra.mxu0 0.0
    %1027 = vmatprep.subr.mxu0 0.0
    %1028 = vmatpush1.msra.mxu0 0.0
    %1029 = vmatprep.subr.mxu0 0.0
    %1030 = vmatpush1.msra.mxu0 0.0
    %1031 = vmatprep.subr.mxu0 0.0
    %1032 = vmatpush1.msra.mxu0 0.0
    %1033 = vmatprep.subr.mxu0 0.0
    %1034 = vmatpush1.msra.mxu0 0.0
    %1035 = vmatprep.subr.mxu0 0.0
    %1036 = vmatpush1.msra.mxu0 0.0
    %1037 = vmatprep.subr.mxu0 0.0
    %1038 = vmatpush1.msra.mxu0 0.0
    %1039 = vmatprep.subr.mxu0 0.0
    %1040 = vmatpush1.msra.mxu0 0.0
    %1041 = vmatprep.subr.mxu0 0.0
    %1042 = vmatpush1.msra.mxu0 0.0
    %1043 = vmatprep.subr.mxu0 0.0
    %1044 = vmatpush1.msra.mxu0 0.0
    %1045 = vmatprep.subr.mxu0 0.0
    %1046 = vmatpush1.msra.mxu0 0.0
    %1047 = vmatprep.subr.mxu0 0.0
    %1048 = vmatpush1.msra.mxu0 0.0
    %1049 = vmatprep.subr.mxu0 0.0
    %1050 = vmatpush1.msra.mxu0 0.0
    %1051 = vmatprep.subr.mxu0 0.0
    %1052 = vmatpush1.msra.mxu0 0.0
    %1053 = vmatprep.subr.mxu0 0.0
    %1054 = vmatpush1.msra.mxu0 0.0
    %1055 = vmatprep.subr.mxu0 0.0
    %1056 = vmatpush1.msra.mxu0 0.0
    %1057 = vmatprep.subr.mxu0 0.0
    %1058 = vmatpush1.msra.mxu0 0.0
    %1059 = vmatprep.subr.mxu0 0.0
    %1060 = vmatpush1.msra.mxu0 0.0
    %1061 = vmatprep.subr.mxu0 0.0
    %1062 = vmatpush1.msra.mxu0 0.0
    %1063 = vmatprep.subr.mxu0 0.0
    %1064 = vmatpush1.msra.mxu0 0.0
    %1065 = vmatprep.subr.mxu0 0.0
    %1066 = vmatpush1.msra.mxu0 0.0
    %1067 = vmatprep.subr.mxu0 0.0
    %1068 = vmatpush1.msra.mxu0 0.0
    %1069 = vmatprep.subr.mxu0 0.0
    %1070 = vmatpush1.msra.mxu0 0.0
    %1071 = vmatprep.subr.mxu0 0.0
    %1072 = vmatpush1.msra.mxu0 0.0
    %1073 = vmatprep.subr.mxu0 0.0
    %1074 = vmatpush1.msra.mxu0 0.0
    %1075 = vmatprep.subr.mxu0 0.0
    %1076 = vmatpush1.msra.mxu0 0.0
    %1077 = vmatprep.subr.mxu0 0.0
    %1078 = vmatpush1.msra.mxu0 0.0
    %1079 = vmatprep.subr.mxu0 0.0
    %1080 = vmatpush1.msra.mxu0 0.0
    %1081 = vmatprep.mubr.f32.mxu0 0.0
    %1082 = vmatmul.mubr.f32.gmra.mrb[0].mxu0 %v944
    %v1083 = vpop.f32.mrb[0].mxu0
    %v1084 = vadd.f32 %v938, %v1083
    %v1085 = vpop.f32.mrb[0].mxu0
    %1086 = vdwg.mxu0
    %s1087 = scalar_lea.vmem [#allocation13], 72
    %1088 = vst [vmem:[%s1087] sm:$0xff] %v1013
    %1089 = vst [vmem:[%s1087 + $0x8] sm:$0xff] %v1015
    %1090 = vst.msk [vmem:[%s1087 + $0x10] sm:$0xff] %vm549, %v1084
    %s1091 = scalar_lea.vmem [#allocation11], 384
    %v1092 = vld [vmem:[%s1091] sm:$0xff]
    %v1093 = vld [vmem:[%s1091 + $0x8] sm:$0xff]
    %v1094 = vld [vmem:[%s1091 + $0x10] sm:$0xff]
    %v1095 = vld [vmem:[%s1091 + $0x18] sm:$0xff]
    %v1096 = vld [vmem:[%s1091 + $0x20] sm:$0xff]
    %v1097 = vld [vmem:[%s1091 + $0x28] sm:$0xff]
    %v1098 = vld [vmem:[%s1091 + $0x30] sm:$0xff]
    %v1099 = vld [vmem:[%s1091 + $0x38] sm:$0xff]
    %v1100 = vld [vmem:[%s1091 + $0x40] sm:$0xff]
    %v1101 = vld [vmem:[%s1091 + $0x48] sm:$0xff]
    %v1102 = vld [vmem:[%s1091 + $0x50] sm:$0xff]
    %v1103 = vld [vmem:[%s1091 + $0x58] sm:$0xff]
    %s1104 = scalar_lea.vmem %s6, 12
    %v1105 = vld [vmem:[%s1104] sm:$0x7]
    %v1107 = vlaneseq
    %v1108 = vshrl.u32 %v1107, 7
    %v1109 = vsub.s32 0, %v1108
    %v1110 = vrot.slane %v1105, %v1109
    %v1111 = vlaneseq
    %v1112 = vshrl.u32 %v1111, 7
    %v1113 = vsub.s32 1, %v1112
    %v1114 = vrot.slane %v1105, %v1113
    %v1115 = vlaneseq
    %v1116 = vshrl.u32 %v1115, 7
    %v1117 = vsub.s32 2, %v1116
    %v1118 = vrot.slane %v1105, %v1117
    %v1123 = vsel %vm402, %v372, 0
    %1125 = vmatprep.subr.mxu0 %v1093
    %1126 = vmatpush1.msra.mxu0 %v1092
    %1127 = vmatprep.subr.mxu0 %v1096
    %1128 = vmatpush1.msra.mxu0 %v1095
    %1129 = vmatprep.subr.mxu0 %v1099
    %1130 = vmatpush1.msra.mxu0 %v1098
    %1131 = vmatprep.subr.mxu0 %v1102
    %1132 = vmatpush1.msra.mxu0 %v1101
    %1133 = vmatprep.subr.mxu0 0.0
    %1134 = vmatpush1.msra.mxu0 0.0
    %1135 = vmatprep.subr.mxu0 0.0
    %1136 = vmatpush1.msra.mxu0 0.0
    %1137 = vmatprep.subr.mxu0 0.0
    %1138 = vmatpush1.msra.mxu0 0.0
    %1139 = vmatprep.subr.mxu0 0.0
    %1140 = vmatpush1.msra.mxu0 0.0
    %1141 = vmatprep.subr.mxu0 0.0
    %1142 = vmatpush1.msra.mxu0 0.0
    %1143 = vmatprep.subr.mxu0 0.0
    %1144 = vmatpush1.msra.mxu0 0.0
    %1145 = vmatprep.subr.mxu0 0.0
    %1146 = vmatpush1.msra.mxu0 0.0
    %1147 = vmatprep.subr.mxu0 0.0
    %1148 = vmatpush1.msra.mxu0 0.0
    %1149 = vmatprep.subr.mxu0 0.0
    %1150 = vmatpush1.msra.mxu0 0.0
    %1151 = vmatprep.subr.mxu0 0.0
    %1152 = vmatpush1.msra.mxu0 0.0
    %1153 = vmatprep.subr.mxu0 0.0
    %1154 = vmatpush1.msra.mxu0 0.0
    %1155 = vmatprep.subr.mxu0 0.0
    %1156 = vmatpush1.msra.mxu0 0.0
    %1157 = vmatprep.subr.mxu0 0.0
    %1158 = vmatpush1.msra.mxu0 0.0
    %1159 = vmatprep.subr.mxu0 0.0
    %1160 = vmatpush1.msra.mxu0 0.0
    %1161 = vmatprep.subr.mxu0 0.0
    %1162 = vmatpush1.msra.mxu0 0.0
    %1163 = vmatprep.subr.mxu0 0.0
    %1164 = vmatpush1.msra.mxu0 0.0
    %1165 = vmatprep.subr.mxu0 0.0
    %1166 = vmatpush1.msra.mxu0 0.0
    %1167 = vmatprep.subr.mxu0 0.0
    %1168 = vmatpush1.msra.mxu0 0.0
    %1169 = vmatprep.subr.mxu0 0.0
    %1170 = vmatpush1.msra.mxu0 0.0
    %1171 = vmatprep.subr.mxu0 0.0
    %1172 = vmatpush1.msra.mxu0 0.0
    %1173 = vmatprep.subr.mxu0 0.0
    %1174 = vmatpush1.msra.mxu0 0.0
    %1175 = vmatprep.subr.mxu0 0.0
    %1176 = vmatpush1.msra.mxu0 0.0
    %1177 = vmatprep.subr.mxu0 0.0
    %1178 = vmatpush1.msra.mxu0 0.0
    %1179 = vmatprep.subr.mxu0 0.0
    %1180 = vmatpush1.msra.mxu0 0.0
    %1181 = vmatprep.subr.mxu0 0.0
    %1182 = vmatpush1.msra.mxu0 0.0
    %1183 = vmatprep.subr.mxu0 0.0
    %1184 = vmatpush1.msra.mxu0 0.0
    %1185 = vmatprep.subr.mxu0 0.0
    %1186 = vmatpush1.msra.mxu0 0.0
    %1187 = vmatprep.subr.mxu0 0.0
    %1188 = vmatpush1.msra.mxu0 0.0
    %1189 = vmatprep.mubr.f32.mxu0 0.0
    %1190 = vmatmul.mubr.f32.gmra.mrb[0].mxu0 %v1123
    %v1191 = vpop.f32.mrb[0].mxu0
    %v1192 = vadd.f32 %v1110, %v1191
    %v1193 = vpop.f32.mrb[0].mxu0
    %v1194 = vadd.f32 %v1114, %v1193
    %1195 = vdwg.mxu0
    %1196 = vmatprep.subr.mxu0 0.0
    %1197 = vmatpush1.msra.mxu0 %v1094
    %1198 = vmatprep.subr.mxu0 0.0
    %1199 = vmatpush1.msra.mxu0 %v1097
    %1200 = vmatprep.subr.mxu0 0.0
    %1201 = vmatpush1.msra.mxu0 %v1100
    %1202 = vmatprep.subr.mxu0 0.0
    %1203 = vmatpush1.msra.mxu0 %v1103
    %1204 = vmatprep.subr.mxu0 0.0
    %1205 = vmatpush1.msra.mxu0 0.0
    %1206 = vmatprep.subr.mxu0 0.0
    %1207 = vmatpush1.msra.mxu0 0.0
    %1208 = vmatprep.subr.mxu0 0.0
    %1209 = vmatpush1.msra.mxu0 0.0
    %1210 = vmatprep.subr.mxu0 0.0
    %1211 = vmatpush1.msra.mxu0 0.0
    %1212 = vmatprep.subr.mxu0 0.0
    %1213 = vmatpush1.msra.mxu0 0.0
    %1214 = vmatprep.subr.mxu0 0.0
    %1215 = vmatpush1.msra.mxu0 0.0
    %1216 = vmatprep.subr.mxu0 0.0
    %1217 = vmatpush1.msra.mxu0 0.0
    %1218 = vmatprep.subr.mxu0 0.0
    %1219 = vmatpush1.msra.mxu0 0.0
    %1220 = vmatprep.subr.mxu0 0.0
    %1221 = vmatpush1.msra.mxu0 0.0
    %1222 = vmatprep.subr.mxu0 0.0
    %1223 = vmatpush1.msra.mxu0 0.0
    %1224 = vmatprep.subr.mxu0 0.0
    %1225 = vmatpush1.msra.mxu0 0.0
    %1226 = vmatprep.subr.mxu0 0.0
    %1227 = vmatpush1.msra.mxu0 0.0
    %1228 = vmatprep.subr.mxu0 0.0
    %1229 = vmatpush1.msra.mxu0 0.0
    %1230 = vmatprep.subr.mxu0 0.0
    %1231 = vmatpush1.msra.mxu0 0.0
    %1232 = vmatprep.subr.mxu0 0.0
    %1233 = vmatpush1.msra.mxu0 0.0
    %1234 = vmatprep.subr.mxu0 0.0
    %1235 = vmatpush1.msra.mxu0 0.0
    %1236 = vmatprep.subr.mxu0 0.0
    %1237 = vmatpush1.msra.mxu0 0.0
    %1238 = vmatprep.subr.mxu0 0.0
    %1239 = vmatpush1.msra.mxu0 0.0
    %1240 = vmatprep.subr.mxu0 0.0
    %1241 = vmatpush1.msra.mxu0 0.0
    %1242 = vmatprep.subr.mxu0 0.0
    %1243 = vmatpush1.msra.mxu0 0.0
    %1244 = vmatprep.subr.mxu0 0.0
    %1245 = vmatpush1.msra.mxu0 0.0
    %1246 = vmatprep.subr.mxu0 0.0
    %1247 = vmatpush1.msra.mxu0 0.0
    %1248 = vmatprep.subr.mxu0 0.0
    %1249 = vmatpush1.msra.mxu0 0.0
    %1250 = vmatprep.subr.mxu0 0.0
    %1251 = vmatpush1.msra.mxu0 0.0
    %1252 = vmatprep.subr.mxu0 0.0
    %1253 = vmatpush1.msra.mxu0 0.0
    %1254 = vmatprep.subr.mxu0 0.0
    %1255 = vmatpush1.msra.mxu0 0.0
    %1256 = vmatprep.subr.mxu0 0.0
    %1257 = vmatpush1.msra.mxu0 0.0
    %1258 = vmatprep.subr.mxu0 0.0
    %1259 = vmatpush1.msra.mxu0 0.0
    %1260 = vmatprep.mubr.f32.mxu0 0.0
    %1261 = vmatmul.mubr.f32.gmra.mrb[0].mxu0 %v1123
    %v1262 = vpop.f32.mrb[0].mxu0
    %v1263 = vadd.f32 %v1118, %v1262
    %v1264 = vpop.f32.mrb[0].mxu0
    %1265 = vdwg.mxu0
    %s1266 = scalar_lea.vmem [#allocation13], 96
    %1267 = vst [vmem:[%s1266] sm:$0xff] %v1192
    %1268 = vst [vmem:[%s1266 + $0x8] sm:$0xff] %v1194
    %1269 = vst.msk [vmem:[%s1266 + $0x10] sm:$0xff] %vm549, %v1263
    %s1270 = scalar_lea.vmem [#allocation11], 480
    %v1271 = vld [vmem:[%s1270] sm:$0xff]
    %v1272 = vld [vmem:[%s1270 + $0x8] sm:$0xff]
    %v1273 = vld [vmem:[%s1270 + $0x10] sm:$0xff]
    %v1274 = vld [vmem:[%s1270 + $0x18] sm:$0xff]
    %v1275 = vld [vmem:[%s1270 + $0x20] sm:$0xff]
    %v1276 = vld [vmem:[%s1270 + $0x28] sm:$0xff]
    %v1277 = vld [vmem:[%s1270 + $0x30] sm:$0xff]
    %v1278 = vld [vmem:[%s1270 + $0x38] sm:$0xff]
    %v1279 = vld [vmem:[%s1270 + $0x40] sm:$0xff]
    %v1280 = vld [vmem:[%s1270 + $0x48] sm:$0xff]
    %v1281 = vld [vmem:[%s1270 + $0x50] sm:$0xff]
    %v1282 = vld [vmem:[%s1270 + $0x58] sm:$0xff]
    %s1283 = scalar_lea.vmem %s6, 15
    %v1284 = vld [vmem:[%s1283] sm:$0x7]
    %v1286 = vlaneseq
    %v1287 = vshrl.u32 %v1286, 7
    %v1288 = vsub.s32 0, %v1287
    %v1289 = vrot.slane %v1284, %v1288
    %v1290 = vlaneseq
    %v1291 = vshrl.u32 %v1290, 7
    %v1292 = vsub.s32 1, %v1291
    %v1293 = vrot.slane %v1284, %v1292
    %v1294 = vlaneseq
    %v1295 = vshrl.u32 %v1294, 7
    %v1296 = vsub.s32 2, %v1295
    %v1297 = vrot.slane %v1284, %v1296
    %1301 = vrot.lane.b32.xlu0 %v372, 96
    %v1302 = vpop.permute.xlu0 %1301
    %v1303 = vsel %vm402, %v1302, 0
    %1305 = vmatprep.subr.mxu0 %v1272
    %1306 = vmatpush1.msra.mxu0 %v1271
    %1307 = vmatprep.subr.mxu0 %v1275
    %1308 = vmatpush1.msra.mxu0 %v1274
    %1309 = vmatprep.subr.mxu0 %v1278
    %1310 = vmatpush1.msra.mxu0 %v1277
    %1311 = vmatprep.subr.mxu0 %v1281
    %1312 = vmatpush1.msra.mxu0 %v1280
    %1313 = vmatprep.subr.mxu0 0.0
    %1314 = vmatpush1.msra.mxu0 0.0
    %1315 = vmatprep.subr.mxu0 0.0
    %1316 = vmatpush1.msra.mxu0 0.0
    %1317 = vmatprep.subr.mxu0 0.0
    %1318 = vmatpush1.msra.mxu0 0.0
    %1319 = vmatprep.subr.mxu0 0.0
    %1320 = vmatpush1.msra.mxu0 0.0
    %1321 = vmatprep.subr.mxu0 0.0
    %1322 = vmatpush1.msra.mxu0 0.0
    %1323 = vmatprep.subr.mxu0 0.0
    %1324 = vmatpush1.msra.mxu0 0.0
    %1325 = vmatprep.subr.mxu0 0.0
    %1326 = vmatpush1.msra.mxu0 0.0
    %1327 = vmatprep.subr.mxu0 0.0
    %1328 = vmatpush1.msra.mxu0 0.0
    %1329 = vmatprep.subr.mxu0 0.0
    %1330 = vmatpush1.msra.mxu0 0.0
    %1331 = vmatprep.subr.mxu0 0.0
    %1332 = vmatpush1.msra.mxu0 0.0
    %1333 = vmatprep.subr.mxu0 0.0
    %1334 = vmatpush1.msra.mxu0 0.0
    %1335 = vmatprep.subr.mxu0 0.0
    %1336 = vmatpush1.msra.mxu0 0.0
    %1337 = vmatprep.subr.mxu0 0.0
    %1338 = vmatpush1.msra.mxu0 0.0
    %1339 = vmatprep.subr.mxu0 0.0
    %1340 = vmatpush1.msra.mxu0 0.0
    %1341 = vmatprep.subr.mxu0 0.0
    %1342 = vmatpush1.msra.mxu0 0.0
    %1343 = vmatprep.subr.mxu0 0.0
    %1344 = vmatpush1.msra.mxu0 0.0
    %1345 = vmatprep.subr.mxu0 0.0
    %1346 = vmatpush1.msra.mxu0 0.0
    %1347 = vmatprep.subr.mxu0 0.0
    %1348 = vmatpush1.msra.mxu0 0.0
    %1349 = vmatprep.subr.mxu0 0.0
    %1350 = vmatpush1.msra.mxu0 0.0
    %1351 = vmatprep.subr.mxu0 0.0
    %1352 = vmatpush1.msra.mxu0 0.0
    %1353 = vmatprep.subr.mxu0 0.0
    %1354 = vmatpush1.msra.mxu0 0.0
    %1355 = vmatprep.subr.mxu0 0.0
    %1356 = vmatpush1.msra.mxu0 0.0
    %1357 = vmatprep.subr.mxu0 0.0
    %1358 = vmatpush1.msra.mxu0 0.0
    %1359 = vmatprep.subr.mxu0 0.0
    %1360 = vmatpush1.msra.mxu0 0.0
    %1361 = vmatprep.subr.mxu0 0.0
    %1362 = vmatpush1.msra.mxu0 0.0
    %1363 = vmatprep.subr.mxu0 0.0
    %1364 = vmatpush1.msra.mxu0 0.0
    %1365 = vmatprep.subr.mxu0 0.0
    %1366 = vmatpush1.msra.mxu0 0.0
    %1367 = vmatprep.subr.mxu0 0.0
    %1368 = vmatpush1.msra.mxu0 0.0
    %1369 = vmatprep.mubr.f32.mxu0 0.0
    %1370 = vmatmul.mubr.f32.gmra.mrb[0].mxu0 %v1303
    %v1371 = vpop.f32.mrb[0].mxu0
    %v1372 = vadd.f32 %v1289, %v1371
    %v1373 = vpop.f32.mrb[0].mxu0
    %v1374 = vadd.f32 %v1293, %v1373
    %1375 = vdwg.mxu0
    %1376 = vmatprep.subr.mxu0 0.0
    %1377 = vmatpush1.msra.mxu0 %v1273
    %1378 = vmatprep.subr.mxu0 0.0
    %1379 = vmatpush1.msra.mxu0 %v1276
    %1380 = vmatprep.subr.mxu0 0.0
    %1381 = vmatpush1.msra.mxu0 %v1279
    %1382 = vmatprep.subr.mxu0 0.0
    %1383 = vmatpush1.msra.mxu0 %v1282
    %1384 = vmatprep.subr.mxu0 0.0
    %1385 = vmatpush1.msra.mxu0 0.0
    %1386 = vmatprep.subr.mxu0 0.0
    %1387 = vmatpush1.msra.mxu0 0.0
    %1388 = vmatprep.subr.mxu0 0.0
    %1389 = vmatpush1.msra.mxu0 0.0
    %1390 = vmatprep.subr.mxu0 0.0
    %1391 = vmatpush1.msra.mxu0 0.0
    %1392 = vmatprep.subr.mxu0 0.0
    %1393 = vmatpush1.msra.mxu0 0.0
    %1394 = vmatprep.subr.mxu0 0.0
    %1395 = vmatpush1.msra.mxu0 0.0
    %1396 = vmatprep.subr.mxu0 0.0
    %1397 = vmatpush1.msra.mxu0 0.0
    %1398 = vmatprep.subr.mxu0 0.0
    %1399 = vmatpush1.msra.mxu0 0.0
    %1400 = vmatprep.subr.mxu0 0.0
    %1401 = vmatpush1.msra.mxu0 0.0
    %1402 = vmatprep.subr.mxu0 0.0
    %1403 = vmatpush1.msra.mxu0 0.0
    %1404 = vmatprep.subr.mxu0 0.0
    %1405 = vmatpush1.msra.mxu0 0.0
    %1406 = vmatprep.subr.mxu0 0.0
    %1407 = vmatpush1.msra.mxu0 0.0
    %1408 = vmatprep.subr.mxu0 0.0
    %1409 = vmatpush1.msra.mxu0 0.0
    %1410 = vmatprep.subr.mxu0 0.0
    %1411 = vmatpush1.msra.mxu0 0.0
    %1412 = vmatprep.subr.mxu0 0.0
    %1413 = vmatpush1.msra.mxu0 0.0
    %1414 = vmatprep.subr.mxu0 0.0
    %1415 = vmatpush1.msra.mxu0 0.0
    %1416 = vmatprep.subr.mxu0 0.0
    %1417 = vmatpush1.msra.mxu0 0.0
    %1418 = vmatprep.subr.mxu0 0.0
    %1419 = vmatpush1.msra.mxu0 0.0
    %1420 = vmatprep.subr.mxu0 0.0
    %1421 = vmatpush1.msra.mxu0 0.0
    %1422 = vmatprep.subr.mxu0 0.0
    %1423 = vmatpush1.msra.mxu0 0.0
    %1424 = vmatprep.subr.mxu0 0.0
    %1425 = vmatpush1.msra.mxu0 0.0
    %1426 = vmatprep.subr.mxu0 0.0
    %1427 = vmatpush1.msra.mxu0 0.0
    %1428 = vmatprep.subr.mxu0 0.0
    %1429 = vmatpush1.msra.mxu0 0.0
    %1430 = vmatprep.subr.mxu0 0.0
    %1431 = vmatpush1.msra.mxu0 0.0
    %1432 = vmatprep.subr.mxu0 0.0
    %1433 = vmatpush1.msra.mxu0 0.0
    %1434 = vmatprep.subr.mxu0 0.0
    %1435 = vmatpush1.msra.mxu0 0.0
    %1436 = vmatprep.subr.mxu0 0.0
    %1437 = vmatpush1.msra.mxu0 0.0
    %1438 = vmatprep.subr.mxu0 0.0
    %1439 = vmatpush1.msra.mxu0 0.0
    %1440 = vmatprep.mubr.f32.mxu0 0.0
    %1441 = vmatmul.mubr.f32.gmra.mrb[0].mxu0 %v1303
    %v1442 = vpop.f32.mrb[0].mxu0
    %v1443 = vadd.f32 %v1297, %v1442
    %v1444 = vpop.f32.mrb[0].mxu0
    %1445 = vdwg.mxu0
    %s1446 = scalar_lea.vmem [#allocation13], 120
    %1447 = vst [vmem:[%s1446] sm:$0xff] %v1372
    %1448 = vst [vmem:[%s1446 + $0x8] sm:$0xff] %v1374
    %1449 = vst.msk [vmem:[%s1446 + $0x10] sm:$0xff] %vm549, %v1443
    %s1450 = scalar_lea.vmem [#allocation11], 576
    %v1451 = vld [vmem:[%s1450] sm:$0xff]
    %v1452 = vld [vmem:[%s1450 + $0x8] sm:$0xff]
    %v1453 = vld [vmem:[%s1450 + $0x10] sm:$0xff]
    %v1454 = vld [vmem:[%s1450 + $0x18] sm:$0xff]
    %v1455 = vld [vmem:[%s1450 + $0x20] sm:$0xff]
    %v1456 = vld [vmem:[%s1450 + $0x28] sm:$0xff]
    %v1457 = vld [vmem:[%s1450 + $0x30] sm:$0xff]
    %v1458 = vld [vmem:[%s1450 + $0x38] sm:$0xff]
    %v1459 = vld [vmem:[%s1450 + $0x40] sm:$0xff]
    %v1460 = vld [vmem:[%s1450 + $0x48] sm:$0xff]
    %v1461 = vld [vmem:[%s1450 + $0x50] sm:$0xff]
    %v1462 = vld [vmem:[%s1450 + $0x58] sm:$0xff]
    %s1463 = scalar_lea.vmem %s6, 18
    %v1464 = vld [vmem:[%s1463] sm:$0x7]
    %v1466 = vlaneseq
    %v1467 = vshrl.u32 %v1466, 7
    %v1468 = vsub.s32 0, %v1467
    %v1469 = vrot.slane %v1464, %v1468
    %v1470 = vlaneseq
    %v1471 = vshrl.u32 %v1470, 7
    %v1472 = vsub.s32 1, %v1471
    %v1473 = vrot.slane %v1464, %v1472
    %v1474 = vlaneseq
    %v1475 = vshrl.u32 %v1474, 7
    %v1476 = vsub.s32 2, %v1475
    %v1477 = vrot.slane %v1464, %v1476
    %1481 = vrot.lane.b32.xlu0 %v372, 64
    %v1482 = vpop.permute.xlu0 %1481
    %v1483 = vsel %vm402, %v1482, 0
    %1485 = vmatprep.subr.mxu0 %v1452
    %1486 = vmatpush1.msra.mxu0 %v1451
    %1487 = vmatprep.subr.mxu0 %v1455
    %1488 = vmatpush1.msra.mxu0 %v1454
    %1489 = vmatprep.subr.mxu0 %v1458
    %1490 = vmatpush1.msra.mxu0 %v1457
    %1491 = vmatprep.subr.mxu0 %v1461
    %1492 = vmatpush1.msra.mxu0 %v1460
    %1493 = vmatprep.subr.mxu0 0.0
    %1494 = vmatpush1.msra.mxu0 0.0
    %1495 = vmatprep.subr.mxu0 0.0
    %1496 = vmatpush1.msra.mxu0 0.0
    %1497 = vmatprep.subr.mxu0 0.0
    %1498 = vmatpush1.msra.mxu0 0.0
    %1499 = vmatprep.subr.mxu0 0.0
    %1500 = vmatpush1.msra.mxu0 0.0
    %1501 = vmatprep.subr.mxu0 0.0
    %1502 = vmatpush1.msra.mxu0 0.0
    %1503 = vmatprep.subr.mxu0 0.0
    %1504 = vmatpush1.msra.mxu0 0.0
    %1505 = vmatprep.subr.mxu0 0.0
    %1506 = vmatpush1.msra.mxu0 0.0
    %1507 = vmatprep.subr.mxu0 0.0
    %1508 = vmatpush1.msra.mxu0 0.0
    %1509 = vmatprep.subr.mxu0 0.0
    %1510 = vmatpush1.msra.mxu0 0.0
    %1511 = vmatprep.subr.mxu0 0.0
    %1512 = vmatpush1.msra.mxu0 0.0
    %1513 = vmatprep.subr.mxu0 0.0
    %1514 = vmatpush1.msra.mxu0 0.0
    %1515 = vmatprep.subr.mxu0 0.0
    %1516 = vmatpush1.msra.mxu0 0.0
    %1517 = vmatprep.subr.mxu0 0.0
    %1518 = vmatpush1.msra.mxu0 0.0
    %1519 = vmatprep.subr.mxu0 0.0
    %1520 = vmatpush1.msra.mxu0 0.0
    %1521 = vmatprep.subr.mxu0 0.0
    %1522 = vmatpush1.msra.mxu0 0.0
    %1523 = vmatprep.subr.mxu0 0.0
    %1524 = vmatpush1.msra.mxu0 0.0
    %1525 = vmatprep.subr.mxu0 0.0
    %1526 = vmatpush1.msra.mxu0 0.0
    %1527 = vmatprep.subr.mxu0 0.0
    %1528 = vmatpush1.msra.mxu0 0.0
    %1529 = vmatprep.subr.mxu0 0.0
    %1530 = vmatpush1.msra.mxu0 0.0
    %1531 = vmatprep.subr.mxu0 0.0
    %1532 = vmatpush1.msra.mxu0 0.0
    %1533 = vmatprep.subr.mxu0 0.0
    %1534 = vmatpush1.msra.mxu0 0.0
    %1535 = vmatprep.subr.mxu0 0.0
    %1536 = vmatpush1.msra.mxu0 0.0
    %1537 = vmatprep.subr.mxu0 0.0
    %1538 = vmatpush1.msra.mxu0 0.0
    %1539 = vmatprep.subr.mxu0 0.0
    %1540 = vmatpush1.msra.mxu0 0.0
    %1541 = vmatprep.subr.mxu0 0.0
    %1542 = vmatpush1.msra.mxu0 0.0
    %1543 = vmatprep.subr.mxu0 0.0
    %1544 = vmatpush1.msra.mxu0 0.0
    %1545 = vmatprep.subr.mxu0 0.0
    %1546 = vmatpush1.msra.mxu0 0.0
    %1547 = vmatprep.subr.mxu0 0.0
    %1548 = vmatpush1.msra.mxu0 0.0
    %1549 = vmatprep.mubr.f32.mxu0 0.0
    %1550 = vmatmul.mubr.f32.gmra.mrb[0].mxu0 %v1483
    %v1551 = vpop.f32.mrb[0].mxu0
    %v1552 = vadd.f32 %v1469, %v1551
    %v1553 = vpop.f32.mrb[0].mxu0
    %v1554 = vadd.f32 %v1473, %v1553
    %1555 = vdwg.mxu0
    %1556 = vmatprep.subr.mxu0 0.0
    %1557 = vmatpush1.msra.mxu0 %v1453
    %1558 = vmatprep.subr.mxu0 0.0
    %1559 = vmatpush1.msra.mxu0 %v1456
    %1560 = vmatprep.subr.mxu0 0.0
    %1561 = vmatpush1.msra.mxu0 %v1459
    %1562 = vmatprep.subr.mxu0 0.0
    %1563 = vmatpush1.msra.mxu0 %v1462
    %1564 = vmatprep.subr.mxu0 0.0
    %1565 = vmatpush1.msra.mxu0 0.0
    %1566 = vmatprep.subr.mxu0 0.0
    %1567 = vmatpush1.msra.mxu0 0.0
    %1568 = vmatprep.subr.mxu0 0.0
    %1569 = vmatpush1.msra.mxu0 0.0
    %1570 = vmatprep.subr.mxu0 0.0
    %1571 = vmatpush1.msra.mxu0 0.0
    %1572 = vmatprep.subr.mxu0 0.0
    %1573 = vmatpush1.msra.mxu0 0.0
    %1574 = vmatprep.subr.mxu0 0.0
    %1575 = vmatpush1.msra.mxu0 0.0
    %1576 = vmatprep.subr.mxu0 0.0
    %1577 = vmatpush1.msra.mxu0 0.0
    %1578 = vmatprep.subr.mxu0 0.0
    %1579 = vmatpush1.msra.mxu0 0.0
    %1580 = vmatprep.subr.mxu0 0.0
    %1581 = vmatpush1.msra.mxu0 0.0
    %1582 = vmatprep.subr.mxu0 0.0
    %1583 = vmatpush1.msra.mxu0 0.0
    %1584 = vmatprep.subr.mxu0 0.0
    %1585 = vmatpush1.msra.mxu0 0.0
    %1586 = vmatprep.subr.mxu0 0.0
    %1587 = vmatpush1.msra.mxu0 0.0
    %1588 = vmatprep.subr.mxu0 0.0
    %1589 = vmatpush1.msra.mxu0 0.0
    %1590 = vmatprep.subr.mxu0 0.0
    %1591 = vmatpush1.msra.mxu0 0.0
    %1592 = vmatprep.subr.mxu0 0.0
    %1593 = vmatpush1.msra.mxu0 0.0
    %1594 = vmatprep.subr.mxu0 0.0
    %1595 = vmatpush1.msra.mxu0 0.0
    %1596 = vmatprep.subr.mxu0 0.0
    %1597 = vmatpush1.msra.mxu0 0.0
    %1598 = vmatprep.subr.mxu0 0.0
    %1599 = vmatpush1.msra.mxu0 0.0
    %1600 = vmatprep.subr.mxu0 0.0
    %1601 = vmatpush1.msra.mxu0 0.0
    %1602 = vmatprep.subr.mxu0 0.0
    %1603 = vmatpush1.msra.mxu0 0.0
    %1604 = vmatprep.subr.mxu0 0.0
    %1605 = vmatpush1.msra.mxu0 0.0
    %1606 = vmatprep.subr.mxu0 0.0
    %1607 = vmatpush1.msra.mxu0 0.0
    %1608 = vmatprep.subr.mxu0 0.0
    %1609 = vmatpush1.msra.mxu0 0.0
    %1610 = vmatprep.subr.mxu0 0.0
    %1611 = vmatpush1.msra.mxu0 0.0
    %1612 = vmatprep.subr.mxu0 0.0
    %1613 = vmatpush1.msra.mxu0 0.0
    %1614 = vmatprep.subr.mxu0 0.0
    %1615 = vmatpush1.msra.mxu0 0.0
    %1616 = vmatprep.subr.mxu0 0.0
    %1617 = vmatpush1.msra.mxu0 0.0
    %1618 = vmatprep.subr.mxu0 0.0
    %1619 = vmatpush1.msra.mxu0 0.0
    %1620 = vmatprep.mubr.f32.mxu0 0.0
    %1621 = vmatmul.mubr.f32.gmra.mrb[0].mxu0 %v1483
    %v1622 = vpop.f32.mrb[0].mxu0
    %v1623 = vadd.f32 %v1477, %v1622
    %v1624 = vpop.f32.mrb[0].mxu0
    %1625 = vdwg.mxu0
    %s1626 = scalar_lea.vmem [#allocation13], 144
    %1627 = vst [vmem:[%s1626] sm:$0xff] %v1552
    %1628 = vst [vmem:[%s1626 + $0x8] sm:$0xff] %v1554
    %1629 = vst.msk [vmem:[%s1626 + $0x10] sm:$0xff] %vm549, %v1623
    // Predicated region
    $region54: #{tpu_custom_call.1} parent=1 // pred_check
      _
    $region55: #{tpu_custom_call.1} parent=1 // pred_check_branch
      %1631 = sbr.rel (0) target = $region57
    $region56: #{tpu_custom_call.1} parent=1 // pred_region
      %s1633 = ssub.s32 2688, 2688
      %1634 = vsyncadd [#allocation4], %s1633
      %s1635 = sshll.u32 [#allocation13], 4
      %s1636 = int_to_ptr.vmem [resolvable:$true] %s1635
      %1641 = dma.vmem_to_hbm [thread:$0]  %s1636, 2688, %s7, [#allocation4], 384, 384, 24
    $region57: #{tpu_custom_call.1} parent=1 // pred_fallthru
      _
    // Predicated region
    $region58: #{tpu_custom_call.1} parent=1 // pred_check
      _
    $region59: #{tpu_custom_call.1} parent=1 // pred_check_branch
      %1643 = sbr.rel (0) target = $region61
    $region60: #{tpu_custom_call.1} parent=1 // pred_region
      %1644 = dma.done [#allocation4], 2688
    $region61: #{tpu_custom_call.1} parent=1 // pred_fallthru
      _
    %1645 = vsyncpa [#allocation3], 1
    %1646 = vsyncpa [#allocation6], 1
    %1647 = vsyncpa [#allocation9], 1
    %1648 = vsyncpa [#allocation12], 1
    %1649 = vsyncpa [#allocation4], 1

</llo_original>
